<compile_context>
chip_gen: v7x
topology: tpu7x:2x2x1
jax: 0.10.0
libtpu: 0.0.40
codegen_flags: <defaults>
</compile_context>

<pallas_src>
import numpy as np
import jax
import jax.numpy as jnp
from jax.experimental import pallas as pl
from jax.experimental.pallas import tpu as pltpu


# ----------------------------------------------------------------------------
# Host-side structural constants (0/1 column-rearrangement matrices, tiny)
# ----------------------------------------------------------------------------
def _pad_insert_matrix(n, h_in, p):
    """(n*h_in, n*(h_in+2p)): insert `p` zero columns before/after each sample."""
    hp = h_in + 2 * p
    m = np.zeros((n * h_in, n * hp), np.float32)
    for s in range(n):
        for h in range(h_in):
            m[s * h_in + h, s * hp + p + h] = 1.0
    return m


def _conv_select_pad_matrix(n, hp, k, stride, hc, hc2):
    """(n*hp-k+1, n*hc2): pick the per-sample valid/strided conv output columns
    and insert one zero column at each end of each sample (maxpool padding)."""
    m = np.zeros((n * hp - k + 1, n * hc2), np.float32)
    for s in range(n):
        for j in range(hc):
            m[s * hp + j * stride, s * hc2 + j + 1] = 1.0
    return m


def _pool_select_matrix(n, hc2, hpool):
    """(n*hc2-1, n*hpool): pick column 2*t of each sample from the pairwise-max."""
    m = np.zeros((n * hc2 - 1, n * hpool), np.float32)
    for s in range(n):
        for t in range(hpool):
            m[s * hc2 + 2 * t, s * hpool + t] = 1.0
    return m


def _mean_expand_matrices(n, hpool):
    """Per-sample mean over H (n*hpool, n) and its broadcast-back (n, n*hpool)."""
    mean = np.zeros((n * hpool, n), np.float32)
    exp = np.zeros((n, n * hpool), np.float32)
    for s in range(n):
        mean[s * hpool:(s + 1) * hpool, s] = 1.0 / hpool
        exp[s, s * hpool:(s + 1) * hpool] = 1.0
    return mean, exp


def _adaptive_avg_matrix(n, h, out_len):
    """(n*h, n*out_len): PyTorch AdaptiveAvgPool bin boundaries, per sample."""
    m = np.zeros((n * h, n * out_len), np.float32)
    for s in range(n):
        for l in range(out_len):
            lo = (l * h) // out_len
            hi = -(-((l + 1) * h) // out_len)
            m[s * h + lo: s * h + hi, s * out_len + l] = 1.0 / (hi - lo)
    return m


# ----------------------------------------------------------------------------
# Fused forward pass (single pallas_call, single grid step)
# ----------------------------------------------------------------------------
def cnn2d_forward(x_nchw, params, cfg, *, compute_dtype=jnp.float32, eps=1e-5):
    """x_nchw: (N, C, H, 1) f32.  Returns (x_flat (N, C*L), x_out (N, C, H', 1))."""
    N, C0, H0, W = x_nchw.shape
    assert W == 1, "CNN2d uses (k,1) kernels; the W axis must be 1"
    L = int(cfg["features_len"])

    # Batch folded into the lane axis: (C0, N*H0).
    x3 = x_nchw[..., 0].astype(jnp.float32)                      # (N, C0, H0)
    x2d = jnp.transpose(x3, (1, 0, 2)).reshape(C0, N * H0)       # (C0, N*H0)

    block_defs = [
        (int(cfg["kernel_size"]), int(cfg["stride"]), params["w1"], params["bn1"], params["ca1"]),
        (8, 1, params["w2"], params["bn2"], params["ca2"]),
        (8, 1, params["w3"], params["bn3"], params["ca3"]),
    ]

    consts = []                                   # packed f32 constants/params

    def add_const(a):
        consts.append(a)
        return len(consts) - 1

    w_mats, metas = [], []
    H_cur, C_cur = H0, C0
    flops, transc = 0, 0
    for b, (K, stride, w, bn, ca) in enumerate(block_defs):
        Kc, Cin, Cout = w.shape
        assert Kc == K and Cin == C_cur
        Cr = ca[0].shape[1]
        P = K // 2
        Hin = H_cur
        Hp = Hin + 2 * P
        Hc = (Hp - K) // stride + 1
        Hc2 = Hc + 2
        Hpool = Hc // 2 + 1

        # BN (eval) folded to scale/bias.
        gamma, beta, mean, var = bn
        inv = jnp.asarray(gamma, jnp.float32) / jnp.sqrt(jnp.asarray(var, jnp.float32) + eps)
        scale = inv.reshape(Cout, 1)
        bias = (jnp.asarray(beta, jnp.float32) - jnp.asarray(mean, jnp.float32) * inv).reshape(Cout, 1)

        w_mats.append(jnp.asarray(w, jnp.float32).reshape(K * Cin, Cout).T)   # (Cout, K*Cin)

        mean_m, exp_m = _mean_expand_matrices(N, Hpool)
        meta = dict(
            K=K, Cin=Cin, Cout=Cout, Wprime=N * Hp - K + 1,
            i_pad=add_const(_pad_insert_matrix(N, Hin, P)),
            i_comb=add_const(_conv_select_pad_matrix(N, Hp, K, stride, Hc, Hc2)),
            i_selp=add_const(_pool_select_matrix(N, Hc2, Hpool)),
            i_mean=add_const(mean_m),
            i_exp=add_const(exp_m),
            i_sb=add_const(jnp.concatenate([scale, bias], axis=1)),           # (Cout, 2)
            i_w1=add_const(jnp.asarray(ca[0], jnp.float32).T),                # (Cr, Cout)
            i_w2=add_const(jnp.asarray(ca[1], jnp.float32).T),                # (Cout, Cr)
        )
        metas.append(meta)

        flops += 2 * Cin * (N * Hin) * (N * Hp)                 # pad insertion
        flops += 2 * Cout * (K * Cin) * (N * Hp - K + 1)        # conv
        flops += 2 * Cout * (N * Hp - K + 1) * (N * Hc2)        # select + pool pad
        flops += 2 * Cout * (N * Hc2 - 1) * (N * Hpool)         # pool even-column pick
        flops += 2 * Cout * (N * Hpool) * N                     # CA mean
        flops += 2 * Cr * Cout * N + 2 * Cout * Cr * N          # CA linears
        flops += 2 * Cout * N * (N * Hpool)                     # CA gate broadcast
        transc += Cout * N                                      # sigmoids

        H_cur, C_cur = Hpool, Cout

    H_out, C_out = H_cur, C_cur
    i_aap = add_const(_adaptive_avg_matrix(N, H_out, L))
    flops += 2 * C_out * (N * H_out) * (N * L)

    # ---- pack constants/params into two slabs (3 kernel inputs total) ----
    rmax = ((max(a.shape[0] for a in consts) + 7) // 8) * 8
    cmax = max(a.shape[1] for a in consts)
    c_slab = jnp.stack([jnp.pad(jnp.asarray(a, jnp.float32),
                                ((0, rmax - a.shape[0]), (0, cmax - a.shape[1])))
                        for a in consts])                              # (n_const, rmax, cmax) f32
    const_shapes = tuple((int(a.shape[0]), int(a.shape[1])) for a in consts)

    wr = ((max(m.shape[0] for m in w_mats) + 7) // 8) * 8
    wc = max(m.shape[1] for m in w_mats)
    w_slab = jnp.stack([jnp.pad(m, ((0, wr - m.shape[0]), (0, wc - m.shape[1])))
                        for m in w_mats]).astype(compute_dtype)        # (3, wr, wc) bf16/f32

    Wout = N * H_out + N * L

    # ---- the fused kernel: whole network, whole batch, one invocation ----
    def kernel(x_ref, w_ref, c_ref, o_ref):
        def cmat(i):                                # exact-shape view of a packed constant
            r, c = const_shapes[i]
            return c_ref[i][:r, :c]

        h = x_ref[...]                              # (C0, N*H0) f32, batch on lanes
        for b, mt in enumerate(metas):
            K, Cin, Cout = mt["K"], mt["Cin"], mt["Cout"]
            # Conv2d((K,1), stride (s,1), pad (K//2,0), bias=False) for ALL samples:
            # per-sample zero pad via a constant matmul (idle MXU), im2col via K
            # lane-shifted slices, one weight matmul (bf16 operands, f32 acc).
            xp = jnp.dot(h, cmat(mt["i_pad"]),
                         preferred_element_type=jnp.float32)           # (Cin, N*Hp)
            Wpr = mt["Wprime"]
            patches = jnp.concatenate([xp[:, dk:dk + Wpr] for dk in range(K)], axis=0)
            wm = w_ref[b][:Cout, :K * Cin]                             # (Cout, K*Cin)
            acc = jnp.dot(wm, patches.astype(wm.dtype),
                          preferred_element_type=jnp.float32)          # (Cout, Wprime)
            # BatchNorm (eval, folded) + ReLU.  Columns off the stride grid or
            # straddling samples are finite garbage and are dropped just below.
            sb = cmat(mt["i_sb"])                                      # (Cout, 2)
            y = jnp.maximum(acc * sb[:, 0:1] + sb[:, 1:2], 0.0)
            # MaxPool2d((2,1), s=(2,1), p=(1,0)): select valid conv columns and
            # insert one zero column per sample end (== -inf pad because y >= 0
            # post-ReLU), pairwise max of adjacent columns, even-column pick.
            ypad = jnp.dot(y, cmat(mt["i_comb"]),
                           preferred_element_type=jnp.float32)         # (Cout, N*(Hc+2))
            z = jnp.maximum(ypad[:, :-1], ypad[:, 1:])
            p = jnp.dot(z, cmat(mt["i_selp"]),
                        preferred_element_type=jnp.float32)            # (Cout, N*Hpool)
            # Dropout: identity in inference mode.
            # CA (SE-style): per-sample avgpool -> C->C/2 -> ReLU -> C/2->C -> sigmoid.
            s = jnp.dot(p, cmat(mt["i_mean"]),
                        preferred_element_type=jnp.float32)            # (Cout, N)
            h1 = jnp.maximum(jnp.dot(cmat(mt["i_w1"]), s,
                                     preferred_element_type=jnp.float32), 0.0)
            g = jax.nn.sigmoid(jnp.dot(cmat(mt["i_w2"]), h1,
                                       preferred_element_type=jnp.float32))
            h = p * jnp.dot(g, cmat(mt["i_exp"]),
                            preferred_element_type=jnp.float32)        # (Cout, N*Hpool)
        # AdaptiveAvgPool2d((L,1)) for all samples; single merged output store.
        feat = jnp.dot(h, cmat(i_aap), preferred_element_type=jnp.float32)   # (C_out, N*L)
        o_ref[...] = jnp.concatenate([h, feat], axis=1)

    cost = pl.CostEstimate(
        flops=int(flops), transcendentals=int(transc),
        bytes_accessed=int(x2d.size * 4 + w_slab.size * w_slab.dtype.itemsize
                           + c_slab.size * 4 + C_out * Wout * 4))

    out_slab = pl.pallas_call(
        kernel,
        out_shape=jax.ShapeDtypeStruct((C_out, Wout), jnp.float32),
        grid_spec=pltpu.PrefetchScalarGridSpec(
            num_scalar_prefetch=0,
            grid=(1,),                                         # whole batch in ONE step
            in_specs=[pl.BlockSpec(x2d.shape, lambda i: (0, 0)),
                      pl.BlockSpec(w_slab.shape, lambda i: (0, 0, 0)),
                      pl.BlockSpec(c_slab.shape, lambda i: (0, 0, 0))],
            out_specs=pl.BlockSpec((C_out, Wout), lambda i: (0, 0)),
        ),
        compiler_params=pltpu.CompilerParams(dimension_semantics=("arbitrary",)),
        cost_estimate=cost,
    )(x2d, w_slab, c_slab)

    # Split the merged slab with free XLA slices/reshapes in the wrapper.
    x_map = out_slab[:, :N * H_out].reshape(C_out, N, H_out)
    feat = out_slab[:, N * H_out:].reshape(C_out, N, L)
    x_out = jnp.transpose(x_map, (1, 0, 2))[..., None]         # (N, C_out, H_out, 1)
    x_flat = jnp.transpose(feat, (1, 0, 2)).reshape(N, C_out * L)
    return x_flat, x_out


def _default_compute_dtype():
    """bf16 conv operands on every TPU generation (f32 accumulation); f32 otherwise."""
    try:
        return jnp.bfloat16 if jax.devices()[0].platform == "tpu" else jnp.float32
    except Exception:
        return jnp.float32


# ----------------------------------------------------------------------------
# Parameters (conv weights stored as (K, Cin, Cout) == torch weight[:, :, k, 0].T layout)
# ----------------------------------------------------------------------------
def init_params(key, cfg):
    C = cfg["final_out_channels"]
    K = cfg["kernel_size"]
    r = 2  # CA reduction (channels are small)
    ks = jax.random.split(key, 16)

    def bn(k, c):
        k1, k2, k3, k4 = jax.random.split(k, 4)
        return (1.0 + 0.1 * jax.random.normal(k1, (c,)),        # gamma
                0.1 * jax.random.normal(k2, (c,)),              # beta
                0.1 * jax.random.normal(k3, (c,)),              # running_mean
                1.0 + 0.1 * jax.random.uniform(k4, (c,)))       # running_var

    def ca(k, c):
        k1, k2 = jax.random.split(k, 2)
        return (0.2 * jax.random.normal(k1, (c, c // r)),
                0.2 * jax.random.normal(k2, (c // r, c)))

    return {
        "w1": 0.1 * jax.random.normal(ks[0], (K, C, 2 * C)),
        "bn1": bn(ks[1], 2 * C),
        "ca1": ca(ks[2], 2 * C),
        "w2": 0.1 * jax.random.normal(ks[3], (8, 2 * C, 4 * C)),
        "bn2": bn(ks[4], 4 * C),
        "ca2": ca(ks[5], 4 * C),
        "w3": 0.1 * jax.random.normal(ks[6], (8, 4 * C, C)),
        "bn3": bn(ks[7], C),
        "ca3": ca(ks[8], C),
    }


# ----------------------------------------------------------------------------
# Pure-JAX (XLA) reference for correctness checking
# ----------------------------------------------------------------------------
def _reference_forward(x_nchw, params, cfg, eps=1e-5):
    x = x_nchw[..., 0].astype(jnp.float32)          # (N, C, H)
    block_defs = [
        (int(cfg["kernel_size"]), int(cfg["stride"]), params["w1"], params["bn1"], params["ca1"]),
        (8, 1, params["w2"], params["bn2"], params["ca2"]),
        (8, 1, params["w3"], params["bn3"], params["ca3"]),
    ]
    for (K, stride, w, bn, ca) in block_defs:
        gamma, beta, mean, var = bn
        P = K // 2
        xp = jnp.pad(x, ((0, 0), (0, 0), (P, P)))
        Hc = (xp.shape[2] - K) // stride + 1
        out = jnp.zeros((x.shape[0], w.shape[2], Hc), jnp.float32)
        for dk in range(K):
            xs = xp[:, :, dk: dk + (Hc - 1) * stride + 1: stride]        # (N, Cin, Hc)
            out = out + jnp.einsum("nch,cd->ndh", xs, w[dk])
        inv = gamma / jnp.sqrt(var + eps)
        y = jnp.maximum(out * inv[None, :, None] + (beta - mean * inv)[None, :, None], 0.0)
        yp = jnp.pad(y, ((0, 0), (0, 0), (1, 1)), constant_values=-jnp.inf)
        Hpool = Hc // 2 + 1
        p = jnp.maximum(yp[:, :, 0:2 * Hpool:2], yp[:, :, 1:2 * Hpool + 1:2])
        s = jnp.mean(p, axis=2)
        h1 = jnp.maximum(s @ ca[0], 0.0)
        g = jax.nn.sigmoid(h1 @ ca[1])
        x = p * g[:, :, None]
    N, C, H = x.shape
    L = int(cfg["features_len"])
    cols = []
    for l in range(L):
        lo = (l * H) // L
        hi = -(-((l + 1) * H) // L)
        cols.append(jnp.mean(x[:, :, lo:hi], axis=2, keepdims=True))
    pooled = jnp.concatenate(cols, axis=2)           # (N, C, L)
    return pooled.reshape(N, -1), x[..., None]


if __name__ == "__main__":
    cfg = {
        "final_out_channels": 4,
        "kernel_size": 8,
        "stride": 1,
        "dropout": 0.35,      # inference: identity
        "features_len": 2,
    }
    key = jax.random.PRNGKey(0)
    k_x, k_p = jax.random.split(key)

    # NCHW, W == 1 (time-series feature map)
    x_in = jax.random.normal(k_x, (2, cfg["final_out_channels"], 16, 1), jnp.float32)
    params = init_params(k_p, cfg)

    cdt = _default_compute_dtype()
    fwd = jax.jit(lambda a: cnn2d_forward(a, params, cfg, compute_dtype=cdt))
    x_flat, x_out = fwd(x_in)
    jax.block_until_ready((x_flat, x_out))

    assert x_out.shape == (2, 4, 4, 1), x_out.shape
    assert x_flat.shape == (2, 4 * cfg["features_len"]), x_flat.shape
    assert bool(jnp.all(jnp.isfinite(x_flat))) and bool(jnp.all(jnp.isfinite(x_out)))

    # Correctness vs a pure-JAX reference (loose tolerance when bf16 operands are used).
    x_flat_ref, x_out_ref = _reference_forward(x_in, params, cfg)
    tol = 2e-2 if cdt == jnp.float32 else 1.5e-1
    assert bool(jnp.allclose(x_out, x_out_ref, atol=tol, rtol=tol)), "x_out mismatch vs reference"
    assert bool(jnp.allclose(x_flat, x_flat_ref, atol=tol, rtol=tol)), "x_flat mismatch vs reference"

    print("KERNEL_OK")
</pallas_src>

<mosaic_0001>
module attributes {stable_mosaic.version = 11 : i64} {
  func.func @kernel(%arg0: i32, %arg1: memref<4x32xf32, #tpu.memory_space<vmem>>, %arg2: memref<3x16x128xf32, #tpu.memory_space<vmem>>, %arg3: memref<25x48x48xf32, #tpu.memory_space<vmem>>, %arg4: memref<4x12xf32, #tpu.memory_space<vmem>>) attributes {dimension_semantics = [#tpu.dimension_semantics<arbitrary>], iteration_bounds = array<i64: 1>, scalar_prefetch = 0 : i64, scratch_operands = 0 : i64, tpu.core_type = #tpu.core_type<tc>, window_params = [{pipeline_mode = #tpu.pipeline_mode<synchronous>, transform_indices = @transform_0, window_bounds = array<i64: 4, 32>}, {pipeline_mode = #tpu.pipeline_mode<synchronous>, transform_indices = @transform_1, window_bounds = array<i64: 3, 16, 128>}, {pipeline_mode = #tpu.pipeline_mode<synchronous>, transform_indices = @transform_2, window_bounds = array<i64: 25, 48, 48>}, {pipeline_mode = #tpu.pipeline_mode<synchronous>, transform_indices = @transform_3, window_bounds = array<i64: 4, 12>}]} {
    %c0 = arith.constant 0 : index
    %c0_0 = arith.constant 0 : index
    %0 = vector.load %arg1[%c0, %c0_0] : memref<4x32xf32, #tpu.memory_space<vmem>>, vector<4x32xf32>
    %c0_1 = arith.constant 0 : index
    %c0_2 = arith.constant 0 : index
    %c0_3 = arith.constant 0 : index
    %1 = vector.load %arg3[%c0_1, %c0_2, %c0_3] : memref<25x48x48xf32, #tpu.memory_space<vmem>>, vector<1x48x48xf32>
    %2 = vector.shape_cast %1 : vector<1x48x48xf32> to vector<48x48xf32>
    %3 = vector.extract_strided_slice %2 {offsets = [0, 0], sizes = [32, 48], strides = [1, 1]} : vector<48x48xf32> to vector<32x48xf32>
    %cst = arith.constant dense<0.000000e+00> : vector<4x48xf32>
    %4 = tpu.matmul %0, %3, %cst {dimension_numbers = #tpu.dot_dimension_numbers<[1], [0], [0], [1], [0, 0, 1, 1], [], []>} : vector<4x32xf32>, vector<32x48xf32>, vector<4x48xf32> -> vector<4x48xf32>
    %5 = vector.extract_strided_slice %4 {offsets = [0, 0], sizes = [4, 41], strides = [1, 1]} : vector<4x48xf32> to vector<4x41xf32>
    %6 = vector.extract_strided_slice %4 {offsets = [0, 1], sizes = [4, 41], strides = [1, 1]} : vector<4x48xf32> to vector<4x41xf32>
    %7 = vector.extract_strided_slice %4 {offsets = [0, 2], sizes = [4, 41], strides = [1, 1]} : vector<4x48xf32> to vector<4x41xf32>
    %8 = vector.extract_strided_slice %4 {offsets = [0, 3], sizes = [4, 41], strides = [1, 1]} : vector<4x48xf32> to vector<4x41xf32>
    %9 = vector.extract_strided_slice %4 {offsets = [0, 4], sizes = [4, 41], strides = [1, 1]} : vector<4x48xf32> to vector<4x41xf32>
    %10 = vector.extract_strided_slice %4 {offsets = [0, 5], sizes = [4, 41], strides = [1, 1]} : vector<4x48xf32> to vector<4x41xf32>
    %11 = vector.extract_strided_slice %4 {offsets = [0, 6], sizes = [4, 41], strides = [1, 1]} : vector<4x48xf32> to vector<4x41xf32>
    %12 = vector.extract_strided_slice %4 {offsets = [0, 7], sizes = [4, 41], strides = [1, 1]} : vector<4x48xf32> to vector<4x41xf32>
    %13 = tpu.concatenate %5, %6, %7, %8, %9, %10, %11, %12 in 0 : vector<4x41xf32>, vector<4x41xf32>, vector<4x41xf32>, vector<4x41xf32>, vector<4x41xf32>, vector<4x41xf32>, vector<4x41xf32>, vector<4x41xf32> -> vector<32x41xf32>
    %c0_4 = arith.constant 0 : index
    %c0_5 = arith.constant 0 : index
    %c0_6 = arith.constant 0 : index
    %14 = vector.load %arg2[%c0_4, %c0_5, %c0_6] : memref<3x16x128xf32, #tpu.memory_space<vmem>>, vector<1x16x128xf32>
    %15 = vector.shape_cast %14 : vector<1x16x128xf32> to vector<16x128xf32>
    %16 = vector.extract_strided_slice %15 {offsets = [0, 0], sizes = [8, 32], strides = [1, 1]} : vector<16x128xf32> to vector<8x32xf32>
    %cst_7 = arith.constant dense<0.000000e+00> : vector<8x41xf32>
    %17 = tpu.matmul %16, %13, %cst_7 {dimension_numbers = #tpu.dot_dimension_numbers<[1], [0], [0], [1], [0, 0, 1, 1], [], []>} : vector<8x32xf32>, vector<32x41xf32>, vector<8x41xf32> -> vector<8x41xf32>
    %c5 = arith.constant 5 : index
    %c0_8 = arith.constant 0 : index
    %c0_9 = arith.constant 0 : index
    %18 = vector.load %arg3[%c5, %c0_8, %c0_9] : memref<25x48x48xf32, #tpu.memory_space<vmem>>, vector<1x48x48xf32>
    %19 = vector.shape_cast %18 : vector<1x48x48xf32> to vector<48x48xf32>
    %20 = vector.extract_strided_slice %19 {offsets = [0, 0], sizes = [8, 2], strides = [1, 1]} : vector<48x48xf32> to vector<8x2xf32>
    %21 = vector.extract_strided_slice %20 {offsets = [0, 0], sizes = [8, 1], strides = [1, 1]} : vector<8x2xf32> to vector<8x1xf32>
    %22 = vector.broadcast %21 : vector<8x1xf32> to vector<8x41xf32>
    %23 = arith.mulf %17, %22 : vector<8x41xf32>
    %24 = vector.extract_strided_slice %20 {offsets = [0, 1], sizes = [8, 1], strides = [1, 1]} : vector<8x2xf32> to vector<8x1xf32>
    %25 = vector.broadcast %24 : vector<8x1xf32> to vector<8x41xf32>
    %26 = arith.addf %23, %25 : vector<8x41xf32>
    %cst_10 = arith.constant 0.000000e+00 : f32
    %27 = vector.broadcast %cst_10 : f32 to vector<8x41xf32>
    %28 = arith.maximumf %26, %27 : vector<8x41xf32>
    %c1 = arith.constant 1 : index
    %c0_11 = arith.constant 0 : index
    %c0_12 = arith.constant 0 : index
    %29 = vector.load %arg3[%c1, %c0_11, %c0_12] : memref<25x48x48xf32, #tpu.memory_space<vmem>>, vector<1x48x48xf32>
    %30 = vector.shape_cast %29 : vector<1x48x48xf32> to vector<48x48xf32>
    %31 = vector.extract_strided_slice %30 {offsets = [0, 0], sizes = [41, 38], strides = [1, 1]} : vector<48x48xf32> to vector<41x38xf32>
    %cst_13 = arith.constant dense<0.000000e+00> : vector<8x38xf32>
    %32 = tpu.matmul %28, %31, %cst_13 {dimension_numbers = #tpu.dot_dimension_numbers<[1], [0], [0], [1], [0, 0, 1, 1], [], []>} : vector<8x41xf32>, vector<41x38xf32>, vector<8x38xf32> -> vector<8x38xf32>
    %33 = vector.extract_strided_slice %32 {offsets = [0, 0], sizes = [8, 37], strides = [1, 1]} : vector<8x38xf32> to vector<8x37xf32>
    %34 = vector.extract_strided_slice %32 {offsets = [0, 1], sizes = [8, 37], strides = [1, 1]} : vector<8x38xf32> to vector<8x37xf32>
    %35 = arith.maximumf %33, %34 : vector<8x37xf32>
    %c2 = arith.constant 2 : index
    %c0_14 = arith.constant 0 : index
    %c0_15 = arith.constant 0 : index
    %36 = vector.load %arg3[%c2, %c0_14, %c0_15] : memref<25x48x48xf32, #tpu.memory_space<vmem>>, vector<1x48x48xf32>
    %37 = vector.shape_cast %36 : vector<1x48x48xf32> to vector<48x48xf32>
    %38 = vector.extract_strided_slice %37 {offsets = [0, 0], sizes = [37, 18], strides = [1, 1]} : vector<48x48xf32> to vector<37x18xf32>
    %cst_16 = arith.constant dense<0.000000e+00> : vector<8x18xf32>
    %39 = tpu.matmul %35, %38, %cst_16 {dimension_numbers = #tpu.dot_dimension_numbers<[1], [0], [0], [1], [0, 0, 1, 1], [], []>} : vector<8x37xf32>, vector<37x18xf32>, vector<8x18xf32> -> vector<8x18xf32>
    %c3 = arith.constant 3 : index
    %c0_17 = arith.constant 0 : index
    %c0_18 = arith.constant 0 : index
    %40 = vector.load %arg3[%c3, %c0_17, %c0_18] : memref<25x48x48xf32, #tpu.memory_space<vmem>>, vector<1x48x48xf32>
    %41 = vector.shape_cast %40 : vector<1x48x48xf32> to vector<48x48xf32>
    %42 = vector.extract_strided_slice %41 {offsets = [0, 0], sizes = [18, 2], strides = [1, 1]} : vector<48x48xf32> to vector<18x2xf32>
    %cst_19 = arith.constant dense<0.000000e+00> : vector<8x2xf32>
    %43 = tpu.matmul %39, %42, %cst_19 {dimension_numbers = #tpu.dot_dimension_numbers<[1], [0], [0], [1], [0, 0, 1, 1], [], []>} : vector<8x18xf32>, vector<18x2xf32>, vector<8x2xf32> -> vector<8x2xf32>
    %c6 = arith.constant 6 : index
    %c0_20 = arith.constant 0 : index
    %c0_21 = arith.constant 0 : index
    %44 = vector.load %arg3[%c6, %c0_20, %c0_21] : memref<25x48x48xf32, #tpu.memory_space<vmem>>, vector<1x48x48xf32>
    %45 = vector.shape_cast %44 : vector<1x48x48xf32> to vector<48x48xf32>
    %46 = vector.extract_strided_slice %45 {offsets = [0, 0], sizes = [4, 8], strides = [1, 1]} : vector<48x48xf32> to vector<4x8xf32>
    %cst_22 = arith.constant dense<0.000000e+00> : vector<4x2xf32>
    %47 = tpu.matmul %46, %43, %cst_22 {dimension_numbers = #tpu.dot_dimension_numbers<[1], [0], [0], [1], [0, 0, 1, 1], [], []>} : vector<4x8xf32>, vector<8x2xf32>, vector<4x2xf32> -> vector<4x2xf32>
    %cst_23 = arith.constant 0.000000e+00 : f32
    %48 = vector.broadcast %cst_23 : f32 to vector<4x2xf32>
    %49 = arith.maximumf %47, %48 : vector<4x2xf32>
    %c7 = arith.constant 7 : index
    %c0_24 = arith.constant 0 : index
    %c0_25 = arith.constant 0 : index
    %50 = vector.load %arg3[%c7, %c0_24, %c0_25] : memref<25x48x48xf32, #tpu.memory_space<vmem>>, vector<1x48x48xf32>
    %51 = vector.shape_cast %50 : vector<1x48x48xf32> to vector<48x48xf32>
    %52 = vector.extract_strided_slice %51 {offsets = [0, 0], sizes = [8, 4], strides = [1, 1]} : vector<48x48xf32> to vector<8x4xf32>
    %cst_26 = arith.constant dense<0.000000e+00> : vector<8x2xf32>
    %53 = tpu.matmul %52, %49, %cst_26 {dimension_numbers = #tpu.dot_dimension_numbers<[1], [0], [0], [1], [0, 0, 1, 1], [], []>} : vector<8x4xf32>, vector<4x2xf32>, vector<8x2xf32> -> vector<8x2xf32>
    %54 = arith.negf %53 : vector<8x2xf32>
    %55 = math.exp %54 : vector<8x2xf32>
    %cst_27 = arith.constant 1.000000e+00 : f32
    %56 = vector.broadcast %cst_27 : f32 to vector<8x2xf32>
    %57 = arith.addf %56, %55 : vector<8x2xf32>
    %58 = arith.divf %56, %57 : vector<8x2xf32>
    %c4 = arith.constant 4 : index
    %c0_28 = arith.constant 0 : index
    %c0_29 = arith.constant 0 : index
    %59 = vector.load %arg3[%c4, %c0_28, %c0_29] : memref<25x48x48xf32, #tpu.memory_space<vmem>>, vector<1x48x48xf32>
    %60 = vector.shape_cast %59 : vector<1x48x48xf32> to vector<48x48xf32>
    %61 = vector.extract_strided_slice %60 {offsets = [0, 0], sizes = [2, 18], strides = [1, 1]} : vector<48x48xf32> to vector<2x18xf32>
    %cst_30 = arith.constant dense<0.000000e+00> : vector<8x18xf32>
    %62 = tpu.matmul %58, %61, %cst_30 {dimension_numbers = #tpu.dot_dimension_numbers<[1], [0], [0], [1], [0, 0, 1, 1], [], []>} : vector<8x2xf32>, vector<2x18xf32>, vector<8x18xf32> -> vector<8x18xf32>
    %63 = arith.mulf %39, %62 : vector<8x18xf32>
    %c8 = arith.constant 8 : index
    %c0_31 = arith.constant 0 : index
    %c0_32 = arith.constant 0 : index
    %64 = vector.load %arg3[%c8, %c0_31, %c0_32] : memref<25x48x48xf32, #tpu.memory_space<vmem>>, vector<1x48x48xf32>
    %65 = vector.shape_cast %64 : vector<1x48x48xf32> to vector<48x48xf32>
    %66 = vector.extract_strided_slice %65 {offsets = [0, 0], sizes = [18, 34], strides = [1, 1]} : vector<48x48xf32> to vector<18x34xf32>
    %cst_33 = arith.constant dense<0.000000e+00> : vector<8x34xf32>
    %67 = tpu.matmul %63, %66, %cst_33 {dimension_numbers = #tpu.dot_dimension_numbers<[1], [0], [0], [1], [0, 0, 1, 1], [], []>} : vector<8x18xf32>, vector<18x34xf32>, vector<8x34xf32> -> vector<8x34xf32>
    %68 = vector.extract_strided_slice %67 {offsets = [0, 0], sizes = [8, 27], strides = [1, 1]} : vector<8x34xf32> to vector<8x27xf32>
    %69 = vector.extract_strided_slice %67 {offsets = [0, 1], sizes = [8, 27], strides = [1, 1]} : vector<8x34xf32> to vector<8x27xf32>
    %70 = vector.extract_strided_slice %67 {offsets = [0, 2], sizes = [8, 27], strides = [1, 1]} : vector<8x34xf32> to vector<8x27xf32>
    %71 = vector.extract_strided_slice %67 {offsets = [0, 3], sizes = [8, 27], strides = [1, 1]} : vector<8x34xf32> to vector<8x27xf32>
    %72 = vector.extract_strided_slice %67 {offsets = [0, 4], sizes = [8, 27], strides = [1, 1]} : vector<8x34xf32> to vector<8x27xf32>
    %73 = vector.extract_strided_slice %67 {offsets = [0, 5], sizes = [8, 27], strides = [1, 1]} : vector<8x34xf32> to vector<8x27xf32>
    %74 = vector.extract_strided_slice %67 {offsets = [0, 6], sizes = [8, 27], strides = [1, 1]} : vector<8x34xf32> to vector<8x27xf32>
    %75 = vector.extract_strided_slice %67 {offsets = [0, 7], sizes = [8, 27], strides = [1, 1]} : vector<8x34xf32> to vector<8x27xf32>
    %76 = tpu.concatenate %68, %69, %70, %71, %72, %73, %74, %75 in 0 : vector<8x27xf32>, vector<8x27xf32>, vector<8x27xf32>, vector<8x27xf32>, vector<8x27xf32>, vector<8x27xf32>, vector<8x27xf32>, vector<8x27xf32> -> vector<64x27xf32>
    %c1_34 = arith.constant 1 : index
    %c0_35 = arith.constant 0 : index
    %c0_36 = arith.constant 0 : index
    %77 = vector.load %arg2[%c1_34, %c0_35, %c0_36] : memref<3x16x128xf32, #tpu.memory_space<vmem>>, vector<1x16x128xf32>
    %78 = vector.shape_cast %77 : vector<1x16x128xf32> to vector<16x128xf32>
    %79 = vector.extract_strided_slice %78 {offsets = [0, 0], sizes = [16, 64], strides = [1, 1]} : vector<16x128xf32> to vector<16x64xf32>
    %cst_37 = arith.constant dense<0.000000e+00> : vector<16x27xf32>
    %80 = tpu.matmul %79, %76, %cst_37 {dimension_numbers = #tpu.dot_dimension_numbers<[1], [0], [0], [1], [0, 0, 1, 1], [], []>} : vector<16x64xf32>, vector<64x27xf32>, vector<16x27xf32> -> vector<16x27xf32>
    %c13 = arith.constant 13 : index
    %c0_38 = arith.constant 0 : index
    %c0_39 = arith.constant 0 : index
    %81 = vector.load %arg3[%c13, %c0_38, %c0_39] : memref<25x48x48xf32, #tpu.memory_space<vmem>>, vector<1x48x48xf32>
    %82 = vector.shape_cast %81 : vector<1x48x48xf32> to vector<48x48xf32>
    %83 = vector.extract_strided_slice %82 {offsets = [0, 0], sizes = [16, 2], strides = [1, 1]} : vector<48x48xf32> to vector<16x2xf32>
    %84 = vector.extract_strided_slice %83 {offsets = [0, 0], sizes = [16, 1], strides = [1, 1]} : vector<16x2xf32> to vector<16x1xf32>
    %85 = vector.broadcast %84 : vector<16x1xf32> to vector<16x27xf32>
    %86 = arith.mulf %80, %85 : vector<16x27xf32>
    %87 = vector.extract_strided_slice %83 {offsets = [0, 1], sizes = [16, 1], strides = [1, 1]} : vector<16x2xf32> to vector<16x1xf32>
    %88 = vector.broadcast %87 : vector<16x1xf32> to vector<16x27xf32>
    %89 = arith.addf %86, %88 : vector<16x27xf32>
    %cst_40 = arith.constant 0.000000e+00 : f32
    %90 = vector.broadcast %cst_40 : f32 to vector<16x27xf32>
    %91 = arith.maximumf %89, %90 : vector<16x27xf32>
    %c9 = arith.constant 9 : index
    %c0_41 = arith.constant 0 : index
    %c0_42 = arith.constant 0 : index
    %92 = vector.load %arg3[%c9, %c0_41, %c0_42] : memref<25x48x48xf32, #tpu.memory_space<vmem>>, vector<1x48x48xf32>
    %93 = vector.shape_cast %92 : vector<1x48x48xf32> to vector<48x48xf32>
    %94 = vector.extract_strided_slice %93 {offsets = [0, 0], sizes = [27, 24], strides = [1, 1]} : vector<48x48xf32> to vector<27x24xf32>
    %cst_43 = arith.constant dense<0.000000e+00> : vector<16x24xf32>
    %95 = tpu.matmul %91, %94, %cst_43 {dimension_numbers = #tpu.dot_dimension_numbers<[1], [0], [0], [1], [0, 0, 1, 1], [], []>} : vector<16x27xf32>, vector<27x24xf32>, vector<16x24xf32> -> vector<16x24xf32>
    %96 = vector.extract_strided_slice %95 {offsets = [0, 0], sizes = [16, 23], strides = [1, 1]} : vector<16x24xf32> to vector<16x23xf32>
    %97 = vector.extract_strided_slice %95 {offsets = [0, 1], sizes = [16, 23], strides = [1, 1]} : vector<16x24xf32> to vector<16x23xf32>
    %98 = arith.maximumf %96, %97 : vector<16x23xf32>
    %c10 = arith.constant 10 : index
    %c0_44 = arith.constant 0 : index
    %c0_45 = arith.constant 0 : index
    %99 = vector.load %arg3[%c10, %c0_44, %c0_45] : memref<25x48x48xf32, #tpu.memory_space<vmem>>, vector<1x48x48xf32>
    %100 = vector.shape_cast %99 : vector<1x48x48xf32> to vector<48x48xf32>
    %101 = vector.extract_strided_slice %100 {offsets = [0, 0], sizes = [23, 12], strides = [1, 1]} : vector<48x48xf32> to vector<23x12xf32>
    %cst_46 = arith.constant dense<0.000000e+00> : vector<16x12xf32>
    %102 = tpu.matmul %98, %101, %cst_46 {dimension_numbers = #tpu.dot_dimension_numbers<[1], [0], [0], [1], [0, 0, 1, 1], [], []>} : vector<16x23xf32>, vector<23x12xf32>, vector<16x12xf32> -> vector<16x12xf32>
    %c11 = arith.constant 11 : index
    %c0_47 = arith.constant 0 : index
    %c0_48 = arith.constant 0 : index
    %103 = vector.load %arg3[%c11, %c0_47, %c0_48] : memref<25x48x48xf32, #tpu.memory_space<vmem>>, vector<1x48x48xf32>
    %104 = vector.shape_cast %103 : vector<1x48x48xf32> to vector<48x48xf32>
    %105 = vector.extract_strided_slice %104 {offsets = [0, 0], sizes = [12, 2], strides = [1, 1]} : vector<48x48xf32> to vector<12x2xf32>
    %cst_49 = arith.constant dense<0.000000e+00> : vector<16x2xf32>
    %106 = tpu.matmul %102, %105, %cst_49 {dimension_numbers = #tpu.dot_dimension_numbers<[1], [0], [0], [1], [0, 0, 1, 1], [], []>} : vector<16x12xf32>, vector<12x2xf32>, vector<16x2xf32> -> vector<16x2xf32>
    %c14 = arith.constant 14 : index
    %c0_50 = arith.constant 0 : index
    %c0_51 = arith.constant 0 : index
    %107 = vector.load %arg3[%c14, %c0_50, %c0_51] : memref<25x48x48xf32, #tpu.memory_space<vmem>>, vector<1x48x48xf32>
    %108 = vector.shape_cast %107 : vector<1x48x48xf32> to vector<48x48xf32>
    %109 = vector.extract_strided_slice %108 {offsets = [0, 0], sizes = [8, 16], strides = [1, 1]} : vector<48x48xf32> to vector<8x16xf32>
    %cst_52 = arith.constant dense<0.000000e+00> : vector<8x2xf32>
    %110 = tpu.matmul %109, %106, %cst_52 {dimension_numbers = #tpu.dot_dimension_numbers<[1], [0], [0], [1], [0, 0, 1, 1], [], []>} : vector<8x16xf32>, vector<16x2xf32>, vector<8x2xf32> -> vector<8x2xf32>
    %cst_53 = arith.constant 0.000000e+00 : f32
    %111 = vector.broadcast %cst_53 : f32 to vector<8x2xf32>
    %112 = arith.maximumf %110, %111 : vector<8x2xf32>
    %c15 = arith.constant 15 : index
    %c0_54 = arith.constant 0 : index
    %c0_55 = arith.constant 0 : index
    %113 = vector.load %arg3[%c15, %c0_54, %c0_55] : memref<25x48x48xf32, #tpu.memory_space<vmem>>, vector<1x48x48xf32>
    %114 = vector.shape_cast %113 : vector<1x48x48xf32> to vector<48x48xf32>
    %115 = vector.extract_strided_slice %114 {offsets = [0, 0], sizes = [16, 8], strides = [1, 1]} : vector<48x48xf32> to vector<16x8xf32>
    %cst_56 = arith.constant dense<0.000000e+00> : vector<16x2xf32>
    %116 = tpu.matmul %115, %112, %cst_56 {dimension_numbers = #tpu.dot_dimension_numbers<[1], [0], [0], [1], [0, 0, 1, 1], [], []>} : vector<16x8xf32>, vector<8x2xf32>, vector<16x2xf32> -> vector<16x2xf32>
    %117 = arith.negf %116 : vector<16x2xf32>
    %118 = math.exp %117 : vector<16x2xf32>
    %cst_57 = arith.constant 1.000000e+00 : f32
    %119 = vector.broadcast %cst_57 : f32 to vector<16x2xf32>
    %120 = arith.addf %119, %118 : vector<16x2xf32>
    %121 = arith.divf %119, %120 : vector<16x2xf32>
    %c12 = arith.constant 12 : index
    %c0_58 = arith.constant 0 : index
    %c0_59 = arith.constant 0 : index
    %122 = vector.load %arg3[%c12, %c0_58, %c0_59] : memref<25x48x48xf32, #tpu.memory_space<vmem>>, vector<1x48x48xf32>
    %123 = vector.shape_cast %122 : vector<1x48x48xf32> to vector<48x48xf32>
    %124 = vector.extract_strided_slice %123 {offsets = [0, 0], sizes = [2, 12], strides = [1, 1]} : vector<48x48xf32> to vector<2x12xf32>
    %cst_60 = arith.constant dense<0.000000e+00> : vector<16x12xf32>
    %125 = tpu.matmul %121, %124, %cst_60 {dimension_numbers = #tpu.dot_dimension_numbers<[1], [0], [0], [1], [0, 0, 1, 1], [], []>} : vector<16x2xf32>, vector<2x12xf32>, vector<16x12xf32> -> vector<16x12xf32>
    %126 = arith.mulf %102, %125 : vector<16x12xf32>
    %c16 = arith.constant 16 : index
    %c0_61 = arith.constant 0 : index
    %c0_62 = arith.constant 0 : index
    %127 = vector.load %arg3[%c16, %c0_61, %c0_62] : memref<25x48x48xf32, #tpu.memory_space<vmem>>, vector<1x48x48xf32>
    %128 = vector.shape_cast %127 : vector<1x48x48xf32> to vector<48x48xf32>
    %129 = vector.extract_strided_slice %128 {offsets = [0, 0], sizes = [12, 28], strides = [1, 1]} : vector<48x48xf32> to vector<12x28xf32>
    %cst_63 = arith.constant dense<0.000000e+00> : vector<16x28xf32>
    %130 = tpu.matmul %126, %129, %cst_63 {dimension_numbers = #tpu.dot_dimension_numbers<[1], [0], [0], [1], [0, 0, 1, 1], [], []>} : vector<16x12xf32>, vector<12x28xf32>, vector<16x28xf32> -> vector<16x28xf32>
    %131 = vector.extract_strided_slice %130 {offsets = [0, 0], sizes = [16, 21], strides = [1, 1]} : vector<16x28xf32> to vector<16x21xf32>
    %132 = vector.extract_strided_slice %130 {offsets = [0, 1], sizes = [16, 21], strides = [1, 1]} : vector<16x28xf32> to vector<16x21xf32>
    %133 = vector.extract_strided_slice %130 {offsets = [0, 2], sizes = [16, 21], strides = [1, 1]} : vector<16x28xf32> to vector<16x21xf32>
    %134 = vector.extract_strided_slice %130 {offsets = [0, 3], sizes = [16, 21], strides = [1, 1]} : vector<16x28xf32> to vector<16x21xf32>
    %135 = vector.extract_strided_slice %130 {offsets = [0, 4], sizes = [16, 21], strides = [1, 1]} : vector<16x28xf32> to vector<16x21xf32>
    %136 = vector.extract_strided_slice %130 {offsets = [0, 5], sizes = [16, 21], strides = [1, 1]} : vector<16x28xf32> to vector<16x21xf32>
    %137 = vector.extract_strided_slice %130 {offsets = [0, 6], sizes = [16, 21], strides = [1, 1]} : vector<16x28xf32> to vector<16x21xf32>
    %138 = vector.extract_strided_slice %130 {offsets = [0, 7], sizes = [16, 21], strides = [1, 1]} : vector<16x28xf32> to vector<16x21xf32>
    %139 = tpu.concatenate %131, %132, %133, %134, %135, %136, %137, %138 in 0 : vector<16x21xf32>, vector<16x21xf32>, vector<16x21xf32>, vector<16x21xf32>, vector<16x21xf32>, vector<16x21xf32>, vector<16x21xf32>, vector<16x21xf32> -> vector<128x21xf32>
    %c2_64 = arith.constant 2 : index
    %c0_65 = arith.constant 0 : index
    %c0_66 = arith.constant 0 : index
    %140 = vector.load %arg2[%c2_64, %c0_65, %c0_66] : memref<3x16x128xf32, #tpu.memory_space<vmem>>, vector<1x16x128xf32>
    %141 = vector.shape_cast %140 : vector<1x16x128xf32> to vector<16x128xf32>
    %142 = vector.extract_strided_slice %141 {offsets = [0, 0], sizes = [4, 128], strides = [1, 1]} : vector<16x128xf32> to vector<4x128xf32>
    %cst_67 = arith.constant dense<0.000000e+00> : vector<4x21xf32>
    %143 = tpu.matmul %142, %139, %cst_67 {dimension_numbers = #tpu.dot_dimension_numbers<[1], [0], [0], [1], [0, 0, 1, 1], [], []>} : vector<4x128xf32>, vector<128x21xf32>, vector<4x21xf32> -> vector<4x21xf32>
    %c21 = arith.constant 21 : index
    %c0_68 = arith.constant 0 : index
    %c0_69 = arith.constant 0 : index
    %144 = vector.load %arg3[%c21, %c0_68, %c0_69] : memref<25x48x48xf32, #tpu.memory_space<vmem>>, vector<1x48x48xf32>
    %145 = vector.shape_cast %144 : vector<1x48x48xf32> to vector<48x48xf32>
    %146 = vector.extract_strided_slice %145 {offsets = [0, 0], sizes = [4, 2], strides = [1, 1]} : vector<48x48xf32> to vector<4x2xf32>
    %147 = vector.extract_strided_slice %146 {offsets = [0, 0], sizes = [4, 1], strides = [1, 1]} : vector<4x2xf32> to vector<4x1xf32>
    %148 = vector.broadcast %147 : vector<4x1xf32> to vector<4x21xf32>
    %149 = arith.mulf %143, %148 : vector<4x21xf32>
    %150 = vector.extract_strided_slice %146 {offsets = [0, 1], sizes = [4, 1], strides = [1, 1]} : vector<4x2xf32> to vector<4x1xf32>
    %151 = vector.broadcast %150 : vector<4x1xf32> to vector<4x21xf32>
    %152 = arith.addf %149, %151 : vector<4x21xf32>
    %cst_70 = arith.constant 0.000000e+00 : f32
    %153 = vector.broadcast %cst_70 : f32 to vector<4x21xf32>
    %154 = arith.maximumf %152, %153 : vector<4x21xf32>
    %c17 = arith.constant 17 : index
    %c0_71 = arith.constant 0 : index
    %c0_72 = arith.constant 0 : index
    %155 = vector.load %arg3[%c17, %c0_71, %c0_72] : memref<25x48x48xf32, #tpu.memory_space<vmem>>, vector<1x48x48xf32>
    %156 = vector.shape_cast %155 : vector<1x48x48xf32> to vector<48x48xf32>
    %157 = vector.extract_strided_slice %156 {offsets = [0, 0], sizes = [21, 18], strides = [1, 1]} : vector<48x48xf32> to vector<21x18xf32>
    %cst_73 = arith.constant dense<0.000000e+00> : vector<4x18xf32>
    %158 = tpu.matmul %154, %157, %cst_73 {dimension_numbers = #tpu.dot_dimension_numbers<[1], [0], [0], [1], [0, 0, 1, 1], [], []>} : vector<4x21xf32>, vector<21x18xf32>, vector<4x18xf32> -> vector<4x18xf32>
    %159 = vector.extract_strided_slice %158 {offsets = [0, 0], sizes = [4, 17], strides = [1, 1]} : vector<4x18xf32> to vector<4x17xf32>
    %160 = vector.extract_strided_slice %158 {offsets = [0, 1], sizes = [4, 17], strides = [1, 1]} : vector<4x18xf32> to vector<4x17xf32>
    %161 = arith.maximumf %159, %160 : vector<4x17xf32>
    %c18 = arith.constant 18 : index
    %c0_74 = arith.constant 0 : index
    %c0_75 = arith.constant 0 : index
    %162 = vector.load %arg3[%c18, %c0_74, %c0_75] : memref<25x48x48xf32, #tpu.memory_space<vmem>>, vector<1x48x48xf32>
    %163 = vector.shape_cast %162 : vector<1x48x48xf32> to vector<48x48xf32>
    %164 = vector.extract_strided_slice %163 {offsets = [0, 0], sizes = [17, 8], strides = [1, 1]} : vector<48x48xf32> to vector<17x8xf32>
    %cst_76 = arith.constant dense<0.000000e+00> : vector<4x8xf32>
    %165 = tpu.matmul %161, %164, %cst_76 {dimension_numbers = #tpu.dot_dimension_numbers<[1], [0], [0], [1], [0, 0, 1, 1], [], []>} : vector<4x17xf32>, vector<17x8xf32>, vector<4x8xf32> -> vector<4x8xf32>
    %c19 = arith.constant 19 : index
    %c0_77 = arith.constant 0 : index
    %c0_78 = arith.constant 0 : index
    %166 = vector.load %arg3[%c19, %c0_77, %c0_78] : memref<25x48x48xf32, #tpu.memory_space<vmem>>, vector<1x48x48xf32>
    %167 = vector.shape_cast %166 : vector<1x48x48xf32> to vector<48x48xf32>
    %168 = vector.extract_strided_slice %167 {offsets = [0, 0], sizes = [8, 2], strides = [1, 1]} : vector<48x48xf32> to vector<8x2xf32>
    %cst_79 = arith.constant dense<0.000000e+00> : vector<4x2xf32>
    %169 = tpu.matmul %165, %168, %cst_79 {dimension_numbers = #tpu.dot_dimension_numbers<[1], [0], [0], [1], [0, 0, 1, 1], [], []>} : vector<4x8xf32>, vector<8x2xf32>, vector<4x2xf32> -> vector<4x2xf32>
    %c22 = arith.constant 22 : index
    %c0_80 = arith.constant 0 : index
    %c0_81 = arith.constant 0 : index
    %170 = vector.load %arg3[%c22, %c0_80, %c0_81] : memref<25x48x48xf32, #tpu.memory_space<vmem>>, vector<1x48x48xf32>
    %171 = vector.shape_cast %170 : vector<1x48x48xf32> to vector<48x48xf32>
    %172 = vector.extract_strided_slice %171 {offsets = [0, 0], sizes = [2, 4], strides = [1, 1]} : vector<48x48xf32> to vector<2x4xf32>
    %cst_82 = arith.constant dense<0.000000e+00> : vector<2x2xf32>
    %173 = tpu.matmul %172, %169, %cst_82 {dimension_numbers = #tpu.dot_dimension_numbers<[1], [0], [0], [1], [0, 0, 1, 1], [], []>} : vector<2x4xf32>, vector<4x2xf32>, vector<2x2xf32> -> vector<2x2xf32>
    %cst_83 = arith.constant 0.000000e+00 : f32
    %174 = vector.broadcast %cst_83 : f32 to vector<2x2xf32>
    %175 = arith.maximumf %173, %174 : vector<2x2xf32>
    %c23 = arith.constant 23 : index
    %c0_84 = arith.constant 0 : index
    %c0_85 = arith.constant 0 : index
    %176 = vector.load %arg3[%c23, %c0_84, %c0_85] : memref<25x48x48xf32, #tpu.memory_space<vmem>>, vector<1x48x48xf32>
    %177 = vector.shape_cast %176 : vector<1x48x48xf32> to vector<48x48xf32>
    %178 = vector.extract_strided_slice %177 {offsets = [0, 0], sizes = [4, 2], strides = [1, 1]} : vector<48x48xf32> to vector<4x2xf32>
    %cst_86 = arith.constant dense<0.000000e+00> : vector<4x2xf32>
    %179 = tpu.matmul %178, %175, %cst_86 {dimension_numbers = #tpu.dot_dimension_numbers<[1], [0], [0], [1], [0, 0, 1, 1], [], []>} : vector<4x2xf32>, vector<2x2xf32>, vector<4x2xf32> -> vector<4x2xf32>
    %180 = arith.negf %179 : vector<4x2xf32>
    %181 = math.exp %180 : vector<4x2xf32>
    %cst_87 = arith.constant 1.000000e+00 : f32
    %182 = vector.broadcast %cst_87 : f32 to vector<4x2xf32>
    %183 = arith.addf %182, %181 : vector<4x2xf32>
    %184 = arith.divf %182, %183 : vector<4x2xf32>
    %c20 = arith.constant 20 : index
    %c0_88 = arith.constant 0 : index
    %c0_89 = arith.constant 0 : index
    %185 = vector.load %arg3[%c20, %c0_88, %c0_89] : memref<25x48x48xf32, #tpu.memory_space<vmem>>, vector<1x48x48xf32>
    %186 = vector.shape_cast %185 : vector<1x48x48xf32> to vector<48x48xf32>
    %187 = vector.extract_strided_slice %186 {offsets = [0, 0], sizes = [2, 8], strides = [1, 1]} : vector<48x48xf32> to vector<2x8xf32>
    %cst_90 = arith.constant dense<0.000000e+00> : vector<4x8xf32>
    %188 = tpu.matmul %184, %187, %cst_90 {dimension_numbers = #tpu.dot_dimension_numbers<[1], [0], [0], [1], [0, 0, 1, 1], [], []>} : vector<4x2xf32>, vector<2x8xf32>, vector<4x8xf32> -> vector<4x8xf32>
    %189 = arith.mulf %165, %188 : vector<4x8xf32>
    %c24 = arith.constant 24 : index
    %c0_91 = arith.constant 0 : index
    %c0_92 = arith.constant 0 : index
    %190 = vector.load %arg3[%c24, %c0_91, %c0_92] : memref<25x48x48xf32, #tpu.memory_space<vmem>>, vector<1x48x48xf32>
    %191 = vector.shape_cast %190 : vector<1x48x48xf32> to vector<48x48xf32>
    %192 = vector.extract_strided_slice %191 {offsets = [0, 0], sizes = [8, 4], strides = [1, 1]} : vector<48x48xf32> to vector<8x4xf32>
    %cst_93 = arith.constant dense<0.000000e+00> : vector<4x4xf32>
    %193 = tpu.matmul %189, %192, %cst_93 {dimension_numbers = #tpu.dot_dimension_numbers<[1], [0], [0], [1], [0, 0, 1, 1], [], []>} : vector<4x8xf32>, vector<8x4xf32>, vector<4x4xf32> -> vector<4x4xf32>
    %194 = tpu.concatenate %189, %193 in 1 : vector<4x8xf32>, vector<4x4xf32> -> vector<4x12xf32>
    %c0_94 = arith.constant 0 : index
    %c0_95 = arith.constant 0 : index
    %195 = vector.load %arg4[%c0_94, %c0_95] : memref<4x12xf32, #tpu.memory_space<vmem>>, vector<4x12xf32>
    tpu.vector_store %arg4[%c0_94, %c0_95], %194 {strides = array<i32>} : memref<4x12xf32, #tpu.memory_space<vmem>>, vector<4x12xf32>,
    return
  }
  func.func @transform_0(%arg0: i32) -> (i32, i32) {
    %c0_i32 = arith.constant 0 : i32
    %c0_i32_0 = arith.constant 0 : i32
    %c0_i32_1 = arith.constant 0 : i32
    return %c0_i32, %c0_i32_0 : i32, i32
  }
  func.func @transform_1(%arg0: i32) -> (i32, i32, i32) {
    %c0_i32 = arith.constant 0 : i32
    %c0_i32_0 = arith.constant 0 : i32
    %c0_i32_1 = arith.constant 0 : i32
    %c0_i32_2 = arith.constant 0 : i32
    return %c0_i32, %c0_i32_0, %c0_i32_1 : i32, i32, i32
  }
  func.func @transform_2(%arg0: i32) -> (i32, i32, i32) {
    %c0_i32 = arith.constant 0 : i32
    %c0_i32_0 = arith.constant 0 : i32
    %c0_i32_1 = arith.constant 0 : i32
    %c0_i32_2 = arith.constant 0 : i32
    return %c0_i32, %c0_i32_0, %c0_i32_1 : i32, i32, i32
  }
  func.func @transform_3(%arg0: i32) -> (i32, i32) {
    %c0_i32 = arith.constant 0 : i32
    %c0_i32_0 = arith.constant 0 : i32
    %c0_i32_1 = arith.constant 0 : i32
    return %c0_i32, %c0_i32_0 : i32, i32
  }
}

</mosaic_0001>

<llo_original>
// kernel: _lambda_.1
$region0: #{_lambda_.1}
  #allocation0 [shape = 'u32[]', space=smem, size = 0x4, offset = 0x4, fixed_abs, tag = 'smem constant byte address 0x4 - core index']
  #allocation1 [shape = 'u32[144,128]{1,0:T(1,128)}', space=vmem, size = 0x12000, scoped, tag = 'internal scratch']
  %s0 = inlined_call_operand.vmem [shape: f32[4,32], index: 0, kind: input, shape index: {}]
  %s1 = inlined_call_operand.hbm [shape: f32[3,16,128], index: 1, kind: input, shape index: {}]
  %s2 = inlined_call_operand.hbm [shape: f32[25,48,48], index: 2, kind: input, shape index: {}]
  %s3 = inlined_call_operand.vmem [shape: f32[4,12], index: 3, kind: output, shape index: {}]
  %s4 = sld [smem:[#allocation0]]
  $region30: #{_lambda_.1} parent=0
    _
  %s6 = ssub.s32 1, %s4
  %s7 = scalar_select 0, %s6, %s4
  $region1: #{_lambda_.1} parent=0
    #allocation2 [shape = 'u8[24576]{0}', space=vmem, size = 0x6000, scoped, tag = 'input window, operand 1, single buffered']
    #allocation3 [shape = 's32[1]{0}', space=sflag, size = 0x4, scoped, tag = 'scoped memory for _lambda_.1']
    #allocation4 [shape = 'u8[614400]{0}', space=vmem, size = 0x96000, scoped, tag = 'input window, operand 2, single buffered']
    #allocation5 [shape = 's32[1]{0}', space=sflag, size = 0x4, scoped, tag = 'scoped memory for _lambda_.1']
    %8 = vsyncpa [#allocation3], 0
    %9 = vsyncpa [#allocation5], 0
    // Predicated region
    $region2: #{_lambda_.1} parent=1 // pred_check
      _
    $region3: #{_lambda_.1} parent=1 // pred_check_branch
      %11 = sbr.rel (0) target = $region5
    $region4: #{_lambda_.1} parent=1 // pred_region
      _
    $region5: #{_lambda_.1} parent=1 // pred_fallthru
      _
    // Predicated region
    $region6: #{_lambda_.1} parent=1 // pred_check
      _
    $region7: #{_lambda_.1} parent=1 // pred_check_branch
      %13 = sbr.rel (0) target = $region9
    $region8: #{_lambda_.1} parent=1 // pred_region
      %s15 = ssub.s32 768, 768
      %16 = vsyncadd [#allocation3], %s15
      %s17 = sshll.u32 [#allocation2], 4
      %s18 = int_to_ptr.vmem [resolvable:$true] %s17
      %23 = dma.hbm_to_vmem [thread:$0]  %s1, 768, %s18, [#allocation3], 128, 128, 8
    $region9: #{_lambda_.1} parent=1 // pred_fallthru
      _
    // Predicated region
    $region10: #{_lambda_.1} parent=1 // pred_check
      _
    $region11: #{_lambda_.1} parent=1 // pred_check_branch
      %25 = sbr.rel (0) target = $region13
    $region12: #{_lambda_.1} parent=1 // pred_region
      %s27 = ssub.s32 19200, 19200
      %28 = vsyncadd [#allocation5], %s27
      %s29 = sshll.u32 [#allocation4], 4
      %s30 = int_to_ptr.vmem [resolvable:$true] %s29
      %35 = dma.hbm_to_vmem [thread:$0]  %s2, 19200, %s30, [#allocation5], 128, 128, 8
    $region13: #{_lambda_.1} parent=1 // pred_fallthru
      _
    // Predicated region
    $region14: #{_lambda_.1} parent=1 // pred_check
      _
    $region15: #{_lambda_.1} parent=1 // pred_check_branch
      %37 = sbr.rel (0) target = $region17
    $region16: #{_lambda_.1} parent=1 // pred_region
      %38 = dma.done [#allocation3], 768
    $region17: #{_lambda_.1} parent=1 // pred_fallthru
      _
    // Predicated region
    $region18: #{_lambda_.1} parent=1 // pred_check
      _
    $region19: #{_lambda_.1} parent=1 // pred_check_branch
      %40 = sbr.rel (0) target = $region21
    $region20: #{_lambda_.1} parent=1 // pred_region
      %41 = dma.done [#allocation5], 19200
    $region21: #{_lambda_.1} parent=1 // pred_fallthru
      _
    %v42 = vld [vmem:[%s0] sm:$0xf]
    %v43 = vld [vmem:[#allocation4] sm:$0xff]
    %v44 = vld [vmem:[#allocation4 + $0x8] sm:$0xff]
    %v45 = vld [vmem:[#allocation4 + $0x10] sm:$0xff]
    %v46 = vld [vmem:[#allocation4 + $0x18] sm:$0xff]
    %vm47 = vcmask 261120
    %v49 = vsel %vm47, %v42, 0
    %51 = vmatprep.subr.mxu0 0.0
    %52 = vmatpush1.msra.mxu0 %v43
    %53 = vmatprep.subr.mxu0 0.0
    %54 = vmatpush1.msra.mxu0 %v44
    %55 = vmatprep.subr.mxu0 0.0
    %56 = vmatpush1.msra.mxu0 %v45
    %57 = vmatprep.subr.mxu0 0.0
    %58 = vmatpush1.msra.mxu0 %v46
    %59 = vmatprep.subr.mxu0 0.0
    %60 = vmatpush1.msra.mxu0 0.0
    %61 = vmatprep.subr.mxu0 0.0
    %62 = vmatpush1.msra.mxu0 0.0
    %63 = vmatprep.subr.mxu0 0.0
    %64 = vmatpush1.msra.mxu0 0.0
    %65 = vmatprep.subr.mxu0 0.0
    %66 = vmatpush1.msra.mxu0 0.0
    %67 = vmatprep.subr.mxu0 0.0
    %68 = vmatpush1.msra.mxu0 0.0
    %69 = vmatprep.subr.mxu0 0.0
    %70 = vmatpush1.msra.mxu0 0.0
    %71 = vmatprep.subr.mxu0 0.0
    %72 = vmatpush1.msra.mxu0 0.0
    %73 = vmatprep.subr.mxu0 0.0
    %74 = vmatpush1.msra.mxu0 0.0
    %75 = vmatprep.subr.mxu0 0.0
    %76 = vmatpush1.msra.mxu0 0.0
    %77 = vmatprep.subr.mxu0 0.0
    %78 = vmatpush1.msra.mxu0 0.0
    %79 = vmatprep.subr.mxu0 0.0
    %80 = vmatpush1.msra.mxu0 0.0
    %81 = vmatprep.subr.mxu0 0.0
    %82 = vmatpush1.msra.mxu0 0.0
    %83 = vmatprep.subr.mxu0 0.0
    %84 = vmatpush1.msra.mxu0 0.0
    %85 = vmatprep.subr.mxu0 0.0
    %86 = vmatpush1.msra.mxu0 0.0
    %87 = vmatprep.subr.mxu0 0.0
    %88 = vmatpush1.msra.mxu0 0.0
    %89 = vmatprep.subr.mxu0 0.0
    %90 = vmatpush1.msra.mxu0 0.0
    %91 = vmatprep.subr.mxu0 0.0
    %92 = vmatpush1.msra.mxu0 0.0
    %93 = vmatprep.subr.mxu0 0.0
    %94 = vmatpush1.msra.mxu0 0.0
    %95 = vmatprep.subr.mxu0 0.0
    %96 = vmatpush1.msra.mxu0 0.0
    %97 = vmatprep.subr.mxu0 0.0
    %98 = vmatpush1.msra.mxu0 0.0
    %99 = vmatprep.subr.mxu0 0.0
    %100 = vmatpush1.msra.mxu0 0.0
    %101 = vmatprep.subr.mxu0 0.0
    %102 = vmatpush1.msra.mxu0 0.0
    %103 = vmatprep.subr.mxu0 0.0
    %104 = vmatpush1.msra.mxu0 0.0
    %105 = vmatprep.subr.mxu0 0.0
    %106 = vmatpush1.msra.mxu0 0.0
    %107 = vmatprep.subr.mxu0 0.0
    %108 = vmatpush1.msra.mxu0 0.0
    %109 = vmatprep.subr.mxu0 0.0
    %110 = vmatpush1.msra.mxu0 0.0
    %111 = vmatprep.subr.mxu0 0.0
    %112 = vmatpush1.msra.mxu0 0.0
    %113 = vmatprep.subr.mxu0 0.0
    %114 = vmatpush1.msra.mxu0 0.0
    %115 = vmatprep.mubr.f32.mxu0 0.0
    %116 = vmatmul.mubr.f32.gmra.mrb[0].mxu0 %v49
    %v117 = vpop.f32.mrb[0].mxu0
    %v118 = vadd.f32 0.0, %v117
    %v119 = vpop.f32.mrb[0].mxu0
    %120 = vdwg.mxu0
    %v122 = vrot.slane %v118, 4
    %123 = vrot.lane.b32.xlu0 %v122, 127
    %v124 = vpop.permute.xlu0 %123
    %126 = vrot.lane.b32.xlu0 %v118, 126
    %v127 = vpop.permute.xlu0 %126
    %129 = vrot.lane.b32.xlu0 %v122, 125
    %v130 = vpop.permute.xlu0 %129
    %132 = vrot.lane.b32.xlu0 %v118, 124
    %v133 = vpop.permute.xlu0 %132
    %135 = vrot.lane.b32.xlu0 %v122, 123
    %v136 = vpop.permute.xlu0 %135
    %138 = vrot.lane.b32.xlu0 %v118, 122
    %v139 = vpop.permute.xlu0 %138
    %141 = vrot.lane.b32.xlu0 %v122, 121
    %v142 = vpop.permute.xlu0 %141
    %vm144 = vcmask 1043456
    %v145 = vsel %vm144, %v118, %v124
    %v146 = vsel %vm144, %v127, %v130
    %v147 = vsel %vm144, %v133, %v136
    %v148 = vsel %vm144, %v139, %v142
    %v149 = vld [vmem:[#allocation2] sm:$0xff]
    %v151 = vsel %vm47, %v149, 0
    %153 = vmatprep.subr.mxu0 0.0
    %154 = vmatpush1.msra.mxu0 %v145
    %155 = vmatprep.subr.mxu0 0.0
    %156 = vmatpush1.msra.mxu0 %v146
    %157 = vmatprep.subr.mxu0 0.0
    %158 = vmatpush1.msra.mxu0 %v147
    %159 = vmatprep.subr.mxu0 0.0
    %160 = vmatpush1.msra.mxu0 %v148
    %161 = vmatprep.subr.mxu0 0.0
    %162 = vmatpush1.msra.mxu0 0.0
    %163 = vmatprep.subr.mxu0 0.0
    %164 = vmatpush1.msra.mxu0 0.0
    %165 = vmatprep.subr.mxu0 0.0
    %166 = vmatpush1.msra.mxu0 0.0
    %167 = vmatprep.subr.mxu0 0.0
    %168 = vmatpush1.msra.mxu0 0.0
    %169 = vmatprep.subr.mxu0 0.0
    %170 = vmatpush1.msra.mxu0 0.0
    %171 = vmatprep.subr.mxu0 0.0
    %172 = vmatpush1.msra.mxu0 0.0
    %173 = vmatprep.subr.mxu0 0.0
    %174 = vmatpush1.msra.mxu0 0.0
    %175 = vmatprep.subr.mxu0 0.0
    %176 = vmatpush1.msra.mxu0 0.0
    %177 = vmatprep.subr.mxu0 0.0
    %178 = vmatpush1.msra.mxu0 0.0
    %179 = vmatprep.subr.mxu0 0.0
    %180 = vmatpush1.msra.mxu0 0.0
    %181 = vmatprep.subr.mxu0 0.0
    %182 = vmatpush1.msra.mxu0 0.0
    %183 = vmatprep.subr.mxu0 0.0
    %184 = vmatpush1.msra.mxu0 0.0
    %185 = vmatprep.subr.mxu0 0.0
    %186 = vmatpush1.msra.mxu0 0.0
    %187 = vmatprep.subr.mxu0 0.0
    %188 = vmatpush1.msra.mxu0 0.0
    %189 = vmatprep.subr.mxu0 0.0
    %190 = vmatpush1.msra.mxu0 0.0
    %191 = vmatprep.subr.mxu0 0.0
    %192 = vmatpush1.msra.mxu0 0.0
    %193 = vmatprep.subr.mxu0 0.0
    %194 = vmatpush1.msra.mxu0 0.0
    %195 = vmatprep.subr.mxu0 0.0
    %196 = vmatpush1.msra.mxu0 0.0
    %197 = vmatprep.subr.mxu0 0.0
    %198 = vmatpush1.msra.mxu0 0.0
    %199 = vmatprep.subr.mxu0 0.0
    %200 = vmatpush1.msra.mxu0 0.0
    %201 = vmatprep.subr.mxu0 0.0
    %202 = vmatpush1.msra.mxu0 0.0
    %203 = vmatprep.subr.mxu0 0.0
    %204 = vmatpush1.msra.mxu0 0.0
    %205 = vmatprep.subr.mxu0 0.0
    %206 = vmatpush1.msra.mxu0 0.0
    %207 = vmatprep.subr.mxu0 0.0
    %208 = vmatpush1.msra.mxu0 0.0
    %209 = vmatprep.subr.mxu0 0.0
    %210 = vmatpush1.msra.mxu0 0.0
    %211 = vmatprep.subr.mxu0 0.0
    %212 = vmatpush1.msra.mxu0 0.0
    %213 = vmatprep.subr.mxu0 0.0
    %214 = vmatpush1.msra.mxu0 0.0
    %215 = vmatprep.subr.mxu0 0.0
    %216 = vmatpush1.msra.mxu0 0.0
    %217 = vmatprep.mubr.f32.mxu0 0.0
    %218 = vmatmul.mubr.f32.gmra.mrb[0].mxu0 %v151
    %v219 = vpop.f32.mrb[0].mxu0
    %v220 = vadd.f32 0.0, %v219
    %v221 = vpop.f32.mrb[0].mxu0
    %222 = vdwg.mxu0
    %s223 = scalar_lea.vmem [#allocation4], 240
    %v224 = vld [vmem:[%s223] sm:$0xff]
    %226 = vset.pattern.permute.xlu0 0
    %227 = vperm.xlu0 %226, %v224
    %v228 = vpop.permute.xlu0 %227
    %v230 = vmul.f32 %v220, %v228
    %231 = vset.pattern.permute.xlu0 1
    %232 = vperm.xlu0 %231, %v224
    %v233 = vpop.permute.xlu0 %232
    %v235 = vadd.f32 %v230, %v233
    %v236 = vmax.f32 %v235, 0.0
    %s237 = scalar_lea.vmem [#allocation4], 48
    %v238 = vld [vmem:[%s237] sm:$0xff]
    %v239 = vld [vmem:[%s237 + $0x8] sm:$0xff]
    %v240 = vld [vmem:[%s237 + $0x10] sm:$0xff]
    %v241 = vld [vmem:[%s237 + $0x18] sm:$0xff]
    %v242 = vld [vmem:[%s237 + $0x20] sm:$0xff]
    %v243 = vld [vmem:[%s237 + $0x28] sm:$0xff]
    %vm244 = vcmask 334848
    %v246 = vsel %vm244, %v236, 0
    %vm248 = vcmask 1040384
    %v250 = vsel %vm248, %v243, 0
    %252 = vmatprep.subr.mxu0 0.0
    %253 = vmatpush1.msra.mxu0 %v238
    %254 = vmatprep.subr.mxu0 0.0
    %255 = vmatpush1.msra.mxu0 %v239
    %256 = vmatprep.subr.mxu0 0.0
    %257 = vmatpush1.msra.mxu0 %v240
    %258 = vmatprep.subr.mxu0 0.0
    %259 = vmatpush1.msra.mxu0 %v241
    %260 = vmatprep.subr.mxu0 0.0
    %261 = vmatpush1.msra.mxu0 %v242
    %262 = vmatprep.subr.mxu0 0.0
    %263 = vmatpush1.msra.mxu0 %v250
    %264 = vmatprep.subr.mxu0 0.0
    %265 = vmatpush1.msra.mxu0 0.0
    %266 = vmatprep.subr.mxu0 0.0
    %267 = vmatpush1.msra.mxu0 0.0
    %268 = vmatprep.subr.mxu0 0.0
    %269 = vmatpush1.msra.mxu0 0.0
    %270 = vmatprep.subr.mxu0 0.0
    %271 = vmatpush1.msra.mxu0 0.0
    %272 = vmatprep.subr.mxu0 0.0
    %273 = vmatpush1.msra.mxu0 0.0
    %274 = vmatprep.subr.mxu0 0.0
    %275 = vmatpush1.msra.mxu0 0.0
    %276 = vmatprep.subr.mxu0 0.0
    %277 = vmatpush1.msra.mxu0 0.0
    %278 = vmatprep.subr.mxu0 0.0
    %279 = vmatpush1.msra.mxu0 0.0
    %280 = vmatprep.subr.mxu0 0.0
    %281 = vmatpush1.msra.mxu0 0.0
    %282 = vmatprep.subr.mxu0 0.0
    %283 = vmatpush1.msra.mxu0 0.0
    %284 = vmatprep.subr.mxu0 0.0
    %285 = vmatpush1.msra.mxu0 0.0
    %286 = vmatprep.subr.mxu0 0.0
    %287 = vmatpush1.msra.mxu0 0.0
    %288 = vmatprep.subr.mxu0 0.0
    %289 = vmatpush1.msra.mxu0 0.0
    %290 = vmatprep.subr.mxu0 0.0
    %291 = vmatpush1.msra.mxu0 0.0
    %292 = vmatprep.subr.mxu0 0.0
    %293 = vmatpush1.msra.mxu0 0.0
    %294 = vmatprep.subr.mxu0 0.0
    %295 = vmatpush1.msra.mxu0 0.0
    %296 = vmatprep.subr.mxu0 0.0
    %297 = vmatpush1.msra.mxu0 0.0
    %298 = vmatprep.subr.mxu0 0.0
    %299 = vmatpush1.msra.mxu0 0.0
    %300 = vmatprep.subr.mxu0 0.0
    %301 = vmatpush1.msra.mxu0 0.0
    %302 = vmatprep.subr.mxu0 0.0
    %303 = vmatpush1.msra.mxu0 0.0
    %304 = vmatprep.subr.mxu0 0.0
    %305 = vmatpush1.msra.mxu0 0.0
    %306 = vmatprep.subr.mxu0 0.0
    %307 = vmatpush1.msra.mxu0 0.0
    %308 = vmatprep.subr.mxu0 0.0
    %309 = vmatpush1.msra.mxu0 0.0
    %310 = vmatprep.subr.mxu0 0.0
    %311 = vmatpush1.msra.mxu0 0.0
    %312 = vmatprep.subr.mxu0 0.0
    %313 = vmatpush1.msra.mxu0 0.0
    %314 = vmatprep.subr.mxu0 0.0
    %315 = vmatpush1.msra.mxu0 0.0
    %316 = vmatprep.mubr.f32.mxu0 0.0
    %317 = vmatmul.mubr.f32.gmra.mrb[0].mxu0 %v246
    %v318 = vpop.f32.mrb[0].mxu0
    %v319 = vadd.f32 0.0, %v318
    %v320 = vpop.f32.mrb[0].mxu0
    %321 = vdwg.mxu0
    %323 = vrot.lane.b32.xlu0 %v319, 127
    %v324 = vpop.permute.xlu0 %323
    %v326 = vmax.f32 %v319, %v324
    %s327 = scalar_lea.vmem [#allocation4], 96
    %v328 = vld [vmem:[%s327] sm:$0xff]
    %v329 = vld [vmem:[%s327 + $0x8] sm:$0xff]
    %v330 = vld [vmem:[%s327 + $0x10] sm:$0xff]
    %v331 = vld [vmem:[%s327 + $0x18] sm:$0xff]
    %v332 = vld [vmem:[%s327 + $0x20] sm:$0xff]
    %vm333 = vcmask 302080
    %v335 = vsel %vm333, %v326, 0
    %vm337 = vcmask 1044480
    %v339 = vsel %vm337, %v332, 0
    %341 = vmatprep.subr.mxu0 0.0
    %342 = vmatpush1.msra.mxu0 %v328
    %343 = vmatprep.subr.mxu0 0.0
    %344 = vmatpush1.msra.mxu0 %v329
    %345 = vmatprep.subr.mxu0 0.0
    %346 = vmatpush1.msra.mxu0 %v330
    %347 = vmatprep.subr.mxu0 0.0
    %348 = vmatpush1.msra.mxu0 %v331
    %349 = vmatprep.subr.mxu0 0.0
    %350 = vmatpush1.msra.mxu0 %v339
    %351 = vmatprep.subr.mxu0 0.0
    %352 = vmatpush1.msra.mxu0 0.0
    %353 = vmatprep.subr.mxu0 0.0
    %354 = vmatpush1.msra.mxu0 0.0
    %355 = vmatprep.subr.mxu0 0.0
    %356 = vmatpush1.msra.mxu0 0.0
    %357 = vmatprep.subr.mxu0 0.0
    %358 = vmatpush1.msra.mxu0 0.0
    %359 = vmatprep.subr.mxu0 0.0
    %360 = vmatpush1.msra.mxu0 0.0
    %361 = vmatprep.subr.mxu0 0.0
    %362 = vmatpush1.msra.mxu0 0.0
    %363 = vmatprep.subr.mxu0 0.0
    %364 = vmatpush1.msra.mxu0 0.0
    %365 = vmatprep.subr.mxu0 0.0
    %366 = vmatpush1.msra.mxu0 0.0
    %367 = vmatprep.subr.mxu0 0.0
    %368 = vmatpush1.msra.mxu0 0.0
    %369 = vmatprep.subr.mxu0 0.0
    %370 = vmatpush1.msra.mxu0 0.0
    %371 = vmatprep.subr.mxu0 0.0
    %372 = vmatpush1.msra.mxu0 0.0
    %373 = vmatprep.subr.mxu0 0.0
    %374 = vmatpush1.msra.mxu0 0.0
    %375 = vmatprep.subr.mxu0 0.0
    %376 = vmatpush1.msra.mxu0 0.0
    %377 = vmatprep.subr.mxu0 0.0
    %378 = vmatpush1.msra.mxu0 0.0
    %379 = vmatprep.subr.mxu0 0.0
    %380 = vmatpush1.msra.mxu0 0.0
    %381 = vmatprep.subr.mxu0 0.0
    %382 = vmatpush1.msra.mxu0 0.0
    %383 = vmatprep.subr.mxu0 0.0
    %384 = vmatpush1.msra.mxu0 0.0
    %385 = vmatprep.subr.mxu0 0.0
    %386 = vmatpush1.msra.mxu0 0.0
    %387 = vmatprep.subr.mxu0 0.0
    %388 = vmatpush1.msra.mxu0 0.0
    %389 = vmatprep.subr.mxu0 0.0
    %390 = vmatpush1.msra.mxu0 0.0
    %391 = vmatprep.subr.mxu0 0.0
    %392 = vmatpush1.msra.mxu0 0.0
    %393 = vmatprep.subr.mxu0 0.0
    %394 = vmatpush1.msra.mxu0 0.0
    %395 = vmatprep.subr.mxu0 0.0
    %396 = vmatpush1.msra.mxu0 0.0
    %397 = vmatprep.subr.mxu0 0.0
    %398 = vmatpush1.msra.mxu0 0.0
    %399 = vmatprep.subr.mxu0 0.0
    %400 = vmatpush1.msra.mxu0 0.0
    %401 = vmatprep.subr.mxu0 0.0
    %402 = vmatpush1.msra.mxu0 0.0
    %403 = vmatprep.subr.mxu0 0.0
    %404 = vmatpush1.msra.mxu0 0.0
    %405 = vmatprep.mubr.f32.mxu0 0.0
    %406 = vmatmul.mubr.f32.gmra.mrb[0].mxu0 %v335
    %v407 = vpop.f32.mrb[0].mxu0
    %v408 = vadd.f32 0.0, %v407
    %v409 = vpop.f32.mrb[0].mxu0
    %410 = vdwg.mxu0
    %s411 = scalar_lea.vmem [#allocation4], 144
    %v412 = vld [vmem:[%s411] sm:$0xff]
    %v413 = vld [vmem:[%s411 + $0x8] sm:$0xff]
    %v414 = vld [vmem:[%s411 + $0x10] sm:$0xff]
    %vm415 = vcmask 146432
    %v417 = vsel %vm415, %v408, 0
    %vm419 = vcmask 1041408
    %v421 = vsel %vm419, %v414, 0
    %423 = vmatprep.subr.mxu0 0.0
    %424 = vmatpush1.msra.mxu0 %v412
    %425 = vmatprep.subr.mxu0 0.0
    %426 = vmatpush1.msra.mxu0 %v413
    %427 = vmatprep.subr.mxu0 0.0
    %428 = vmatpush1.msra.mxu0 %v421
    %429 = vmatprep.subr.mxu0 0.0
    %430 = vmatpush1.msra.mxu0 0.0
    %431 = vmatprep.subr.mxu0 0.0
    %432 = vmatpush1.msra.mxu0 0.0
    %433 = vmatprep.subr.mxu0 0.0
    %434 = vmatpush1.msra.mxu0 0.0
    %435 = vmatprep.subr.mxu0 0.0
    %436 = vmatpush1.msra.mxu0 0.0
    %437 = vmatprep.subr.mxu0 0.0
    %438 = vmatpush1.msra.mxu0 0.0
    %439 = vmatprep.subr.mxu0 0.0
    %440 = vmatpush1.msra.mxu0 0.0
    %441 = vmatprep.subr.mxu0 0.0
    %442 = vmatpush1.msra.mxu0 0.0
    %443 = vmatprep.subr.mxu0 0.0
    %444 = vmatpush1.msra.mxu0 0.0
    %445 = vmatprep.subr.mxu0 0.0
    %446 = vmatpush1.msra.mxu0 0.0
    %447 = vmatprep.subr.mxu0 0.0
    %448 = vmatpush1.msra.mxu0 0.0
    %449 = vmatprep.subr.mxu0 0.0
    %450 = vmatpush1.msra.mxu0 0.0
    %451 = vmatprep.subr.mxu0 0.0
    %452 = vmatpush1.msra.mxu0 0.0
    %453 = vmatprep.subr.mxu0 0.0
    %454 = vmatpush1.msra.mxu0 0.0
    %455 = vmatprep.subr.mxu0 0.0
    %456 = vmatpush1.msra.mxu0 0.0
    %457 = vmatprep.subr.mxu0 0.0
    %458 = vmatpush1.msra.mxu0 0.0
    %459 = vmatprep.subr.mxu0 0.0
    %460 = vmatpush1.msra.mxu0 0.0
    %461 = vmatprep.subr.mxu0 0.0
    %462 = vmatpush1.msra.mxu0 0.0
    %463 = vmatprep.subr.mxu0 0.0
    %464 = vmatpush1.msra.mxu0 0.0
    %465 = vmatprep.subr.mxu0 0.0
    %466 = vmatpush1.msra.mxu0 0.0
    %467 = vmatprep.subr.mxu0 0.0
    %468 = vmatpush1.msra.mxu0 0.0
    %469 = vmatprep.subr.mxu0 0.0
    %470 = vmatpush1.msra.mxu0 0.0
    %471 = vmatprep.subr.mxu0 0.0
    %472 = vmatpush1.msra.mxu0 0.0
    %473 = vmatprep.subr.mxu0 0.0
    %474 = vmatpush1.msra.mxu0 0.0
    %475 = vmatprep.subr.mxu0 0.0
    %476 = vmatpush1.msra.mxu0 0.0
    %477 = vmatprep.subr.mxu0 0.0
    %478 = vmatpush1.msra.mxu0 0.0
    %479 = vmatprep.subr.mxu0 0.0
    %480 = vmatpush1.msra.mxu0 0.0
    %481 = vmatprep.subr.mxu0 0.0
    %482 = vmatpush1.msra.mxu0 0.0
    %483 = vmatprep.subr.mxu0 0.0
    %484 = vmatpush1.msra.mxu0 0.0
    %485 = vmatprep.subr.mxu0 0.0
    %486 = vmatpush1.msra.mxu0 0.0
    %487 = vmatprep.mubr.f32.mxu0 0.0
    %488 = vmatmul.mubr.f32.gmra.mrb[0].mxu0 %v417
    %v489 = vpop.f32.mrb[0].mxu0
    %v490 = vadd.f32 0.0, %v489
    %v491 = vpop.f32.mrb[0].mxu0
    %492 = vdwg.mxu0
    %s493 = scalar_lea.vmem [#allocation4], 288
    %v494 = vld [vmem:[%s493] sm:$0xff]
    %vm495 = vcmask 64512
    %v497 = vsel %vm495, %v494, 0
    %499 = vmatprep.subr.mxu0 0.0
    %500 = vmatpush1.msra.mxu0 %v490
    %501 = vmatprep.subr.mxu0 0.0
    %502 = vmatpush1.msra.mxu0 0.0
    %503 = vmatprep.subr.mxu0 0.0
    %504 = vmatpush1.msra.mxu0 0.0
    %505 = vmatprep.subr.mxu0 0.0
    %506 = vmatpush1.msra.mxu0 0.0
    %507 = vmatprep.subr.mxu0 0.0
    %508 = vmatpush1.msra.mxu0 0.0
    %509 = vmatprep.subr.mxu0 0.0
    %510 = vmatpush1.msra.mxu0 0.0
    %511 = vmatprep.subr.mxu0 0.0
    %512 = vmatpush1.msra.mxu0 0.0
    %513 = vmatprep.subr.mxu0 0.0
    %514 = vmatpush1.msra.mxu0 0.0
    %515 = vmatprep.subr.mxu0 0.0
    %516 = vmatpush1.msra.mxu0 0.0
    %517 = vmatprep.subr.mxu0 0.0
    %518 = vmatpush1.msra.mxu0 0.0
    %519 = vmatprep.subr.mxu0 0.0
    %520 = vmatpush1.msra.mxu0 0.0
    %521 = vmatprep.subr.mxu0 0.0
    %522 = vmatpush1.msra.mxu0 0.0
    %523 = vmatprep.subr.mxu0 0.0
    %524 = vmatpush1.msra.mxu0 0.0
    %525 = vmatprep.subr.mxu0 0.0
    %526 = vmatpush1.msra.mxu0 0.0
    %527 = vmatprep.subr.mxu0 0.0
    %528 = vmatpush1.msra.mxu0 0.0
    %529 = vmatprep.subr.mxu0 0.0
    %530 = vmatpush1.msra.mxu0 0.0
    %531 = vmatprep.subr.mxu0 0.0
    %532 = vmatpush1.msra.mxu0 0.0
    %533 = vmatprep.subr.mxu0 0.0
    %534 = vmatpush1.msra.mxu0 0.0
    %535 = vmatprep.subr.mxu0 0.0
    %536 = vmatpush1.msra.mxu0 0.0
    %537 = vmatprep.subr.mxu0 0.0
    %538 = vmatpush1.msra.mxu0 0.0
    %539 = vmatprep.subr.mxu0 0.0
    %540 = vmatpush1.msra.mxu0 0.0
    %541 = vmatprep.subr.mxu0 0.0
    %542 = vmatpush1.msra.mxu0 0.0
    %543 = vmatprep.subr.mxu0 0.0
    %544 = vmatpush1.msra.mxu0 0.0
    %545 = vmatprep.subr.mxu0 0.0
    %546 = vmatpush1.msra.mxu0 0.0
    %547 = vmatprep.subr.mxu0 0.0
    %548 = vmatpush1.msra.mxu0 0.0
    %549 = vmatprep.subr.mxu0 0.0
    %550 = vmatpush1.msra.mxu0 0.0
    %551 = vmatprep.subr.mxu0 0.0
    %552 = vmatpush1.msra.mxu0 0.0
    %553 = vmatprep.subr.mxu0 0.0
    %554 = vmatpush1.msra.mxu0 0.0
    %555 = vmatprep.subr.mxu0 0.0
    %556 = vmatpush1.msra.mxu0 0.0
    %557 = vmatprep.subr.mxu0 0.0
    %558 = vmatpush1.msra.mxu0 0.0
    %559 = vmatprep.subr.mxu0 0.0
    %560 = vmatpush1.msra.mxu0 0.0
    %561 = vmatprep.subr.mxu0 0.0
    %562 = vmatpush1.msra.mxu0 0.0
    %563 = vmatprep.mubr.f32.mxu0 0.0
    %564 = vmatmul.mubr.f32.gmra.mrb[0].mxu0 %v497
    %v565 = vpop.f32.mrb[0].mxu0
    %v566 = vadd.f32 0.0, %v565
    %v567 = vpop.f32.mrb[0].mxu0
    %568 = vdwg.mxu0
    %v569 = vmax.f32 %v566, 0.0
    %s570 = scalar_lea.vmem [#allocation4], 336
    %v571 = vld [vmem:[%s570] sm:$0xff]
    %vm572 = vcmask 31744
    %v574 = vsel %vm572, %v571, 0
    %v577 = vsel %vm144, %v569, 0
    %579 = vmatprep.subr.mxu0 0.0
    %580 = vmatpush1.msra.mxu0 %v577
    %581 = vmatprep.subr.mxu0 0.0
    %582 = vmatpush1.msra.mxu0 0.0
    %583 = vmatprep.subr.mxu0 0.0
    %584 = vmatpush1.msra.mxu0 0.0
    %585 = vmatprep.subr.mxu0 0.0
    %586 = vmatpush1.msra.mxu0 0.0
    %587 = vmatprep.subr.mxu0 0.0
    %588 = vmatpush1.msra.mxu0 0.0
    %589 = vmatprep.subr.mxu0 0.0
    %590 = vmatpush1.msra.mxu0 0.0
    %591 = vmatprep.subr.mxu0 0.0
    %592 = vmatpush1.msra.mxu0 0.0
    %593 = vmatprep.subr.mxu0 0.0
    %594 = vmatpush1.msra.mxu0 0.0
    %595 = vmatprep.subr.mxu0 0.0
    %596 = vmatpush1.msra.mxu0 0.0
    %597 = vmatprep.subr.mxu0 0.0
    %598 = vmatpush1.msra.mxu0 0.0
    %599 = vmatprep.subr.mxu0 0.0
    %600 = vmatpush1.msra.mxu0 0.0
    %601 = vmatprep.subr.mxu0 0.0
    %602 = vmatpush1.msra.mxu0 0.0
    %603 = vmatprep.subr.mxu0 0.0
    %604 = vmatpush1.msra.mxu0 0.0
    %605 = vmatprep.subr.mxu0 0.0
    %606 = vmatpush1.msra.mxu0 0.0
    %607 = vmatprep.subr.mxu0 0.0
    %608 = vmatpush1.msra.mxu0 0.0
    %609 = vmatprep.subr.mxu0 0.0
    %610 = vmatpush1.msra.mxu0 0.0
    %611 = vmatprep.subr.mxu0 0.0
    %612 = vmatpush1.msra.mxu0 0.0
    %613 = vmatprep.subr.mxu0 0.0
    %614 = vmatpush1.msra.mxu0 0.0
    %615 = vmatprep.subr.mxu0 0.0
    %616 = vmatpush1.msra.mxu0 0.0
    %617 = vmatprep.subr.mxu0 0.0
    %618 = vmatpush1.msra.mxu0 0.0
    %619 = vmatprep.subr.mxu0 0.0
    %620 = vmatpush1.msra.mxu0 0.0
    %621 = vmatprep.subr.mxu0 0.0
    %622 = vmatpush1.msra.mxu0 0.0
    %623 = vmatprep.subr.mxu0 0.0
    %624 = vmatpush1.msra.mxu0 0.0
    %625 = vmatprep.subr.mxu0 0.0
    %626 = vmatpush1.msra.mxu0 0.0
    %627 = vmatprep.subr.mxu0 0.0
    %628 = vmatpush1.msra.mxu0 0.0
    %629 = vmatprep.subr.mxu0 0.0
    %630 = vmatpush1.msra.mxu0 0.0
    %631 = vmatprep.subr.mxu0 0.0
    %632 = vmatpush1.msra.mxu0 0.0
    %633 = vmatprep.subr.mxu0 0.0
    %634 = vmatpush1.msra.mxu0 0.0
    %635 = vmatprep.subr.mxu0 0.0
    %636 = vmatpush1.msra.mxu0 0.0
    %637 = vmatprep.subr.mxu0 0.0
    %638 = vmatpush1.msra.mxu0 0.0
    %639 = vmatprep.subr.mxu0 0.0
    %640 = vmatpush1.msra.mxu0 0.0
    %641 = vmatprep.subr.mxu0 0.0
    %642 = vmatpush1.msra.mxu0 0.0
    %643 = vmatprep.mubr.f32.mxu0 0.0
    %644 = vmatmul.mubr.f32.gmra.mrb[0].mxu0 %v574
    %v645 = vpop.f32.mrb[0].mxu0
    %v646 = vadd.f32 0.0, %v645
    %v647 = vpop.f32.mrb[0].mxu0
    %648 = vdwg.mxu0
    %v649 = vxor.u32 %v646, 2147483648
    %v650 = vmul.f32 %v649, 1.442695
    %v651 = vpow.pop %v650
    %v652 = vadd.f32 %v651, 1.0
    %v653 = vrcp.pop %v652
    %v654 = vmul.f32 1.0, %v653
    %s655 = scalar_lea.vmem [#allocation4], 192
    %v656 = vld [vmem:[%s655] sm:$0xff]
    %vm657 = vcmask 15360
    %v659 = vsel %vm657, %v654, 0
    %v662 = vsel %vm419, %v656, 0
    %664 = vmatprep.subr.mxu0 0.0
    %665 = vmatpush1.msra.mxu0 %v662
    %666 = vmatprep.subr.mxu0 0.0
    %667 = vmatpush1.msra.mxu0 0.0
    %668 = vmatprep.subr.mxu0 0.0
    %669 = vmatpush1.msra.mxu0 0.0
    %670 = vmatprep.subr.mxu0 0.0
    %671 = vmatpush1.msra.mxu0 0.0
    %672 = vmatprep.subr.mxu0 0.0
    %673 = vmatpush1.msra.mxu0 0.0
    %674 = vmatprep.subr.mxu0 0.0
    %675 = vmatpush1.msra.mxu0 0.0
    %676 = vmatprep.subr.mxu0 0.0
    %677 = vmatpush1.msra.mxu0 0.0
    %678 = vmatprep.subr.mxu0 0.0
    %679 = vmatpush1.msra.mxu0 0.0
    %680 = vmatprep.subr.mxu0 0.0
    %681 = vmatpush1.msra.mxu0 0.0
    %682 = vmatprep.subr.mxu0 0.0
    %683 = vmatpush1.msra.mxu0 0.0
    %684 = vmatprep.subr.mxu0 0.0
    %685 = vmatpush1.msra.mxu0 0.0
    %686 = vmatprep.subr.mxu0 0.0
    %687 = vmatpush1.msra.mxu0 0.0
    %688 = vmatprep.subr.mxu0 0.0
    %689 = vmatpush1.msra.mxu0 0.0
    %690 = vmatprep.subr.mxu0 0.0
    %691 = vmatpush1.msra.mxu0 0.0
    %692 = vmatprep.subr.mxu0 0.0
    %693 = vmatpush1.msra.mxu0 0.0
    %694 = vmatprep.subr.mxu0 0.0
    %695 = vmatpush1.msra.mxu0 0.0
    %696 = vmatprep.subr.mxu0 0.0
    %697 = vmatpush1.msra.mxu0 0.0
    %698 = vmatprep.subr.mxu0 0.0
    %699 = vmatpush1.msra.mxu0 0.0
    %700 = vmatprep.subr.mxu0 0.0
    %701 = vmatpush1.msra.mxu0 0.0
    %702 = vmatprep.subr.mxu0 0.0
    %703 = vmatpush1.msra.mxu0 0.0
    %704 = vmatprep.subr.mxu0 0.0
    %705 = vmatpush1.msra.mxu0 0.0
    %706 = vmatprep.subr.mxu0 0.0
    %707 = vmatpush1.msra.mxu0 0.0
    %708 = vmatprep.subr.mxu0 0.0
    %709 = vmatpush1.msra.mxu0 0.0
    %710 = vmatprep.subr.mxu0 0.0
    %711 = vmatpush1.msra.mxu0 0.0
    %712 = vmatprep.subr.mxu0 0.0
    %713 = vmatpush1.msra.mxu0 0.0
    %714 = vmatprep.subr.mxu0 0.0
    %715 = vmatpush1.msra.mxu0 0.0
    %716 = vmatprep.subr.mxu0 0.0
    %717 = vmatpush1.msra.mxu0 0.0
    %718 = vmatprep.subr.mxu0 0.0
    %719 = vmatpush1.msra.mxu0 0.0
    %720 = vmatprep.subr.mxu0 0.0
    %721 = vmatpush1.msra.mxu0 0.0
    %722 = vmatprep.subr.mxu0 0.0
    %723 = vmatpush1.msra.mxu0 0.0
    %724 = vmatprep.subr.mxu0 0.0
    %725 = vmatpush1.msra.mxu0 0.0
    %726 = vmatprep.subr.mxu0 0.0
    %727 = vmatpush1.msra.mxu0 0.0
    %728 = vmatprep.mubr.f32.mxu0 0.0
    %729 = vmatmul.mubr.f32.gmra.mrb[0].mxu0 %v659
    %v730 = vpop.f32.mrb[0].mxu0
    %v731 = vadd.f32 0.0, %v730
    %v732 = vpop.f32.mrb[0].mxu0
    %733 = vdwg.mxu0
    %v734 = vmul.f32 %v408, %v731
    %s735 = scalar_lea.vmem [#allocation4], 384
    %v736 = vld [vmem:[%s735] sm:$0xff]
    %v737 = vld [vmem:[%s735 + $0x8] sm:$0xff]
    %v738 = vld [vmem:[%s735 + $0x10] sm:$0xff]
    %v740 = vsel %vm415, %v734, 0
    %v743 = vsel %vm419, %v738, 0
    %745 = vmatprep.subr.mxu0 0.0
    %746 = vmatpush1.msra.mxu0 %v736
    %747 = vmatprep.subr.mxu0 0.0
    %748 = vmatpush1.msra.mxu0 %v737
    %749 = vmatprep.subr.mxu0 0.0
    %750 = vmatpush1.msra.mxu0 %v743
    %751 = vmatprep.subr.mxu0 0.0
    %752 = vmatpush1.msra.mxu0 0.0
    %753 = vmatprep.subr.mxu0 0.0
    %754 = vmatpush1.msra.mxu0 0.0
    %755 = vmatprep.subr.mxu0 0.0
    %756 = vmatpush1.msra.mxu0 0.0
    %757 = vmatprep.subr.mxu0 0.0
    %758 = vmatpush1.msra.mxu0 0.0
    %759 = vmatprep.subr.mxu0 0.0
    %760 = vmatpush1.msra.mxu0 0.0
    %761 = vmatprep.subr.mxu0 0.0
    %762 = vmatpush1.msra.mxu0 0.0
    %763 = vmatprep.subr.mxu0 0.0
    %764 = vmatpush1.msra.mxu0 0.0
    %765 = vmatprep.subr.mxu0 0.0
    %766 = vmatpush1.msra.mxu0 0.0
    %767 = vmatprep.subr.mxu0 0.0
    %768 = vmatpush1.msra.mxu0 0.0
    %769 = vmatprep.subr.mxu0 0.0
    %770 = vmatpush1.msra.mxu0 0.0
    %771 = vmatprep.subr.mxu0 0.0
    %772 = vmatpush1.msra.mxu0 0.0
    %773 = vmatprep.subr.mxu0 0.0
    %774 = vmatpush1.msra.mxu0 0.0
    %775 = vmatprep.subr.mxu0 0.0
    %776 = vmatpush1.msra.mxu0 0.0
    %777 = vmatprep.subr.mxu0 0.0
    %778 = vmatpush1.msra.mxu0 0.0
    %779 = vmatprep.subr.mxu0 0.0
    %780 = vmatpush1.msra.mxu0 0.0
    %781 = vmatprep.subr.mxu0 0.0
    %782 = vmatpush1.msra.mxu0 0.0
    %783 = vmatprep.subr.mxu0 0.0
    %784 = vmatpush1.msra.mxu0 0.0
    %785 = vmatprep.subr.mxu0 0.0
    %786 = vmatpush1.msra.mxu0 0.0
    %787 = vmatprep.subr.mxu0 0.0
    %788 = vmatpush1.msra.mxu0 0.0
    %789 = vmatprep.subr.mxu0 0.0
    %790 = vmatpush1.msra.mxu0 0.0
    %791 = vmatprep.subr.mxu0 0.0
    %792 = vmatpush1.msra.mxu0 0.0
    %793 = vmatprep.subr.mxu0 0.0
    %794 = vmatpush1.msra.mxu0 0.0
    %795 = vmatprep.subr.mxu0 0.0
    %796 = vmatpush1.msra.mxu0 0.0
    %797 = vmatprep.subr.mxu0 0.0
    %798 = vmatpush1.msra.mxu0 0.0
    %799 = vmatprep.subr.mxu0 0.0
    %800 = vmatpush1.msra.mxu0 0.0
    %801 = vmatprep.subr.mxu0 0.0
    %802 = vmatpush1.msra.mxu0 0.0
    %803 = vmatprep.subr.mxu0 0.0
    %804 = vmatpush1.msra.mxu0 0.0
    %805 = vmatprep.subr.mxu0 0.0
    %806 = vmatpush1.msra.mxu0 0.0
    %807 = vmatprep.subr.mxu0 0.0
    %808 = vmatpush1.msra.mxu0 0.0
    %809 = vmatprep.mubr.f32.mxu0 0.0
    %810 = vmatmul.mubr.f32.gmra.mrb[0].mxu0 %v740
    %v811 = vpop.f32.mrb[0].mxu0
    %v812 = vadd.f32 0.0, %v811
    %v813 = vpop.f32.mrb[0].mxu0
    %814 = vdwg.mxu0
    %816 = vrot.lane.b32.xlu0 %v812, 127
    %v817 = vpop.permute.xlu0 %816
    %819 = vrot.lane.b32.xlu0 %v812, 126
    %v820 = vpop.permute.xlu0 %819
    %822 = vrot.lane.b32.xlu0 %v812, 125
    %v823 = vpop.permute.xlu0 %822
    %825 = vrot.lane.b32.xlu0 %v812, 124
    %v826 = vpop.permute.xlu0 %825
    %828 = vrot.lane.b32.xlu0 %v812, 123
    %v829 = vpop.permute.xlu0 %828
    %831 = vrot.lane.b32.xlu0 %v812, 122
    %v832 = vpop.permute.xlu0 %831
    %834 = vrot.lane.b32.xlu0 %v812, 121
    %v835 = vpop.permute.xlu0 %834
    %s837 = scalar_lea.vmem [#allocation2], 16
    %v838 = vld [vmem:[%s837] sm:$0xff]
    %v839 = vld [vmem:[%s837 + $0x8] sm:$0xff]
    %vm840 = vcmask 523264
    %v842 = vsel %vm840, %v838, 0
    %v845 = vsel %vm840, %v839, 0
    %847 = vmatprep.subr.mxu0 0.0
    %848 = vmatpush1.msra.mxu0 %v812
    %849 = vmatprep.subr.mxu0 0.0
    %850 = vmatpush1.msra.mxu0 %v817
    %851 = vmatprep.subr.mxu0 0.0
    %852 = vmatpush1.msra.mxu0 %v820
    %853 = vmatprep.subr.mxu0 0.0
    %854 = vmatpush1.msra.mxu0 %v823
    %855 = vmatprep.subr.mxu0 0.0
    %856 = vmatpush1.msra.mxu0 %v826
    %857 = vmatprep.subr.mxu0 0.0
    %858 = vmatpush1.msra.mxu0 %v829
    %859 = vmatprep.subr.mxu0 0.0
    %860 = vmatpush1.msra.mxu0 %v832
    %861 = vmatprep.subr.mxu0 0.0
    %862 = vmatpush1.msra.mxu0 %v835
    %863 = vmatprep.subr.mxu0 0.0
    %864 = vmatpush1.msra.mxu0 0.0
    %865 = vmatprep.subr.mxu0 0.0
    %866 = vmatpush1.msra.mxu0 0.0
    %867 = vmatprep.subr.mxu0 0.0
    %868 = vmatpush1.msra.mxu0 0.0
    %869 = vmatprep.subr.mxu0 0.0
    %870 = vmatpush1.msra.mxu0 0.0
    %871 = vmatprep.subr.mxu0 0.0
    %872 = vmatpush1.msra.mxu0 0.0
    %873 = vmatprep.subr.mxu0 0.0
    %874 = vmatpush1.msra.mxu0 0.0
    %875 = vmatprep.subr.mxu0 0.0
    %876 = vmatpush1.msra.mxu0 0.0
    %877 = vmatprep.subr.mxu0 0.0
    %878 = vmatpush1.msra.mxu0 0.0
    %879 = vmatprep.subr.mxu0 0.0
    %880 = vmatpush1.msra.mxu0 0.0
    %881 = vmatprep.subr.mxu0 0.0
    %882 = vmatpush1.msra.mxu0 0.0
    %883 = vmatprep.subr.mxu0 0.0
    %884 = vmatpush1.msra.mxu0 0.0
    %885 = vmatprep.subr.mxu0 0.0
    %886 = vmatpush1.msra.mxu0 0.0
    %887 = vmatprep.subr.mxu0 0.0
    %888 = vmatpush1.msra.mxu0 0.0
    %889 = vmatprep.subr.mxu0 0.0
    %890 = vmatpush1.msra.mxu0 0.0
    %891 = vmatprep.subr.mxu0 0.0
    %892 = vmatpush1.msra.mxu0 0.0
    %893 = vmatprep.subr.mxu0 0.0
    %894 = vmatpush1.msra.mxu0 0.0
    %895 = vmatprep.subr.mxu0 0.0
    %896 = vmatpush1.msra.mxu0 0.0
    %897 = vmatprep.subr.mxu0 0.0
    %898 = vmatpush1.msra.mxu0 0.0
    %899 = vmatprep.subr.mxu0 0.0
    %900 = vmatpush1.msra.mxu0 0.0
    %901 = vmatprep.subr.mxu0 0.0
    %902 = vmatpush1.msra.mxu0 0.0
    %903 = vmatprep.subr.mxu0 0.0
    %904 = vmatpush1.msra.mxu0 0.0
    %905 = vmatprep.subr.mxu0 0.0
    %906 = vmatpush1.msra.mxu0 0.0
    %907 = vmatprep.subr.mxu0 0.0
    %908 = vmatpush1.msra.mxu0 0.0
    %909 = vmatprep.subr.mxu0 0.0
    %910 = vmatpush1.msra.mxu0 0.0
    %911 = vmatprep.mubr.f32.mxu0 0.0
    %912 = vmatmul.mubr.f32.gmra.mrb[0].mxu0 %v842
    %v913 = vpop.f32.mrb[0].mxu0
    %v914 = vadd.f32 0.0, %v913
    %v915 = vpop.f32.mrb[0].mxu0
    %916 = vmatprep.mubr.f32.mxu0 0.0
    %917 = vmatmul.mubr.f32.gmra.mrb[0].mxu0 %v845
    %v918 = vpop.f32.mrb[0].mxu0
    %v919 = vadd.f32 0.0, %v918
    %v920 = vpop.f32.mrb[0].mxu0
    %921 = vdwg.mxu0
    %s922 = scalar_lea.vmem [#allocation4], 624
    %v923 = vld [vmem:[%s922] sm:$0xff]
    %v924 = vld [vmem:[%s922 + $0x8] sm:$0xff]
    %926 = vset.pattern.permute.xlu0 0
    %927 = vperm.xlu0 %926, %v923
    %v928 = vpop.permute.xlu0 %927
    %931 = vset.pattern.permute.xlu0 0
    %932 = vperm.xlu0 %931, %v924
    %v933 = vpop.permute.xlu0 %932
    %v935 = vmul.f32 %v914, %v928
    %v936 = vmul.f32 %v919, %v933
    %937 = vset.pattern.permute.xlu0 1
    %938 = vperm.xlu0 %937, %v923
    %v939 = vpop.permute.xlu0 %938
    %941 = vset.pattern.permute.xlu0 1
    %942 = vperm.xlu0 %941, %v924
    %v943 = vpop.permute.xlu0 %942
    %v945 = vadd.f32 %v935, %v939
    %v946 = vadd.f32 %v936, %v943
    %v947 = vmax.f32 %v945, 0.0
    %v948 = vmax.f32 %v946, 0.0
    %s949 = scalar_lea.vmem [#allocation4], 432
    %v950 = vld [vmem:[%s949] sm:$0xff]
    %v951 = vld [vmem:[%s949 + $0x8] sm:$0xff]
    %v952 = vld [vmem:[%s949 + $0x10] sm:$0xff]
    %v953 = vld [vmem:[%s949 + $0x18] sm:$0xff]
    %vm954 = vcmask 220160
    %v956 = vsel %vm954, %v947, 0
    %v959 = vsel %vm954, %v948, 0
    %vm961 = vcmask 1042432
    %v963 = vsel %vm961, %v953, 0
    %965 = vmatprep.subr.mxu0 0.0
    %966 = vmatpush1.msra.mxu0 %v950
    %967 = vmatprep.subr.mxu0 0.0
    %968 = vmatpush1.msra.mxu0 %v951
    %969 = vmatprep.subr.mxu0 0.0
    %970 = vmatpush1.msra.mxu0 %v952
    %971 = vmatprep.subr.mxu0 0.0
    %972 = vmatpush1.msra.mxu0 %v963
    %973 = vmatprep.subr.mxu0 0.0
    %974 = vmatpush1.msra.mxu0 0.0
    %975 = vmatprep.subr.mxu0 0.0
    %976 = vmatpush1.msra.mxu0 0.0
    %977 = vmatprep.subr.mxu0 0.0
    %978 = vmatpush1.msra.mxu0 0.0
    %979 = vmatprep.subr.mxu0 0.0
    %980 = vmatpush1.msra.mxu0 0.0
    %981 = vmatprep.subr.mxu0 0.0
    %982 = vmatpush1.msra.mxu0 0.0
    %983 = vmatprep.subr.mxu0 0.0
    %984 = vmatpush1.msra.mxu0 0.0
    %985 = vmatprep.subr.mxu0 0.0
    %986 = vmatpush1.msra.mxu0 0.0
    %987 = vmatprep.subr.mxu0 0.0
    %988 = vmatpush1.msra.mxu0 0.0
    %989 = vmatprep.subr.mxu0 0.0
    %990 = vmatpush1.msra.mxu0 0.0
    %991 = vmatprep.subr.mxu0 0.0
    %992 = vmatpush1.msra.mxu0 0.0
    %993 = vmatprep.subr.mxu0 0.0
    %994 = vmatpush1.msra.mxu0 0.0
    %995 = vmatprep.subr.mxu0 0.0
    %996 = vmatpush1.msra.mxu0 0.0
    %997 = vmatprep.subr.mxu0 0.0
    %998 = vmatpush1.msra.mxu0 0.0
    %999 = vmatprep.subr.mxu0 0.0
    %1000 = vmatpush1.msra.mxu0 0.0
    %1001 = vmatprep.subr.mxu0 0.0
    %1002 = vmatpush1.msra.mxu0 0.0
    %1003 = vmatprep.subr.mxu0 0.0
    %1004 = vmatpush1.msra.mxu0 0.0
    %1005 = vmatprep.subr.mxu0 0.0
    %1006 = vmatpush1.msra.mxu0 0.0
    %1007 = vmatprep.subr.mxu0 0.0
    %1008 = vmatpush1.msra.mxu0 0.0
    %1009 = vmatprep.subr.mxu0 0.0
    %1010 = vmatpush1.msra.mxu0 0.0
    %1011 = vmatprep.subr.mxu0 0.0
    %1012 = vmatpush1.msra.mxu0 0.0
    %1013 = vmatprep.subr.mxu0 0.0
    %1014 = vmatpush1.msra.mxu0 0.0
    %1015 = vmatprep.subr.mxu0 0.0
    %1016 = vmatpush1.msra.mxu0 0.0
    %1017 = vmatprep.subr.mxu0 0.0
    %1018 = vmatpush1.msra.mxu0 0.0
    %1019 = vmatprep.subr.mxu0 0.0
    %1020 = vmatpush1.msra.mxu0 0.0
    %1021 = vmatprep.subr.mxu0 0.0
    %1022 = vmatpush1.msra.mxu0 0.0
    %1023 = vmatprep.subr.mxu0 0.0
    %1024 = vmatpush1.msra.mxu0 0.0
    %1025 = vmatprep.subr.mxu0 0.0
    %1026 = vmatpush1.msra.mxu0 0.0
    %1027 = vmatprep.subr.mxu0 0.0
    %1028 = vmatpush1.msra.mxu0 0.0
    %1029 = vmatprep.mubr.f32.mxu0 0.0
    %1030 = vmatmul.mubr.f32.gmra.mrb[0].mxu0 %v956
    %v1031 = vpop.f32.mrb[0].mxu0
    %v1032 = vadd.f32 0.0, %v1031
    %v1033 = vpop.f32.mrb[0].mxu0
    %1034 = vmatprep.mubr.f32.mxu0 0.0
    %1035 = vmatmul.mubr.f32.gmra.mrb[0].mxu0 %v959
    %v1036 = vpop.f32.mrb[0].mxu0
    %v1037 = vadd.f32 0.0, %v1036
    %v1038 = vpop.f32.mrb[0].mxu0
    %1039 = vdwg.mxu0
    %1042 = vrot.lane.b32.xlu0 %v1032, 127
    %v1043 = vpop.permute.xlu0 %1042
    %1044 = vrot.lane.b32.xlu0 %v1037, 127
    %v1045 = vpop.permute.xlu0 %1044
    %v1048 = vmax.f32 %v1032, %v1043
    %v1049 = vmax.f32 %v1037, %v1045
    %s1050 = scalar_lea.vmem [#allocation4], 480
    %v1051 = vld [vmem:[%s1050] sm:$0xff]
    %v1052 = vld [vmem:[%s1050 + $0x8] sm:$0xff]
    %v1053 = vld [vmem:[%s1050 + $0x10] sm:$0xff]
    %vm1054 = vcmask 187392
    %v1056 = vsel %vm1054, %v1048, 0
    %v1059 = vsel %vm1054, %v1049, 0
    %vm1061 = vcmask 1046528
    %v1063 = vsel %vm1061, %v1053, 0
    %1065 = vmatprep.subr.mxu0 0.0
    %1066 = vmatpush1.msra.mxu0 %v1051
    %1067 = vmatprep.subr.mxu0 0.0
    %1068 = vmatpush1.msra.mxu0 %v1052
    %1069 = vmatprep.subr.mxu0 0.0
    %1070 = vmatpush1.msra.mxu0 %v1063
    %1071 = vmatprep.subr.mxu0 0.0
    %1072 = vmatpush1.msra.mxu0 0.0
    %1073 = vmatprep.subr.mxu0 0.0
    %1074 = vmatpush1.msra.mxu0 0.0
    %1075 = vmatprep.subr.mxu0 0.0
    %1076 = vmatpush1.msra.mxu0 0.0
    %1077 = vmatprep.subr.mxu0 0.0
    %1078 = vmatpush1.msra.mxu0 0.0
    %1079 = vmatprep.subr.mxu0 0.0
    %1080 = vmatpush1.msra.mxu0 0.0
    %1081 = vmatprep.subr.mxu0 0.0
    %1082 = vmatpush1.msra.mxu0 0.0
    %1083 = vmatprep.subr.mxu0 0.0
    %1084 = vmatpush1.msra.mxu0 0.0
    %1085 = vmatprep.subr.mxu0 0.0
    %1086 = vmatpush1.msra.mxu0 0.0
    %1087 = vmatprep.subr.mxu0 0.0
    %1088 = vmatpush1.msra.mxu0 0.0
    %1089 = vmatprep.subr.mxu0 0.0
    %1090 = vmatpush1.msra.mxu0 0.0
    %1091 = vmatprep.subr.mxu0 0.0
    %1092 = vmatpush1.msra.mxu0 0.0
    %1093 = vmatprep.subr.mxu0 0.0
    %1094 = vmatpush1.msra.mxu0 0.0
    %1095 = vmatprep.subr.mxu0 0.0
    %1096 = vmatpush1.msra.mxu0 0.0
    %1097 = vmatprep.subr.mxu0 0.0
    %1098 = vmatpush1.msra.mxu0 0.0
    %1099 = vmatprep.subr.mxu0 0.0
    %1100 = vmatpush1.msra.mxu0 0.0
    %1101 = vmatprep.subr.mxu0 0.0
    %1102 = vmatpush1.msra.mxu0 0.0
    %1103 = vmatprep.subr.mxu0 0.0
    %1104 = vmatpush1.msra.mxu0 0.0
    %1105 = vmatprep.subr.mxu0 0.0
    %1106 = vmatpush1.msra.mxu0 0.0
    %1107 = vmatprep.subr.mxu0 0.0
    %1108 = vmatpush1.msra.mxu0 0.0
    %1109 = vmatprep.subr.mxu0 0.0
    %1110 = vmatpush1.msra.mxu0 0.0
    %1111 = vmatprep.subr.mxu0 0.0
    %1112 = vmatpush1.msra.mxu0 0.0
    %1113 = vmatprep.subr.mxu0 0.0
    %1114 = vmatpush1.msra.mxu0 0.0
    %1115 = vmatprep.subr.mxu0 0.0
    %1116 = vmatpush1.msra.mxu0 0.0
    %1117 = vmatprep.subr.mxu0 0.0
    %1118 = vmatpush1.msra.mxu0 0.0
    %1119 = vmatprep.subr.mxu0 0.0
    %1120 = vmatpush1.msra.mxu0 0.0
    %1121 = vmatprep.subr.mxu0 0.0
    %1122 = vmatpush1.msra.mxu0 0.0
    %1123 = vmatprep.subr.mxu0 0.0
    %1124 = vmatpush1.msra.mxu0 0.0
    %1125 = vmatprep.subr.mxu0 0.0
    %1126 = vmatpush1.msra.mxu0 0.0
    %1127 = vmatprep.subr.mxu0 0.0
    %1128 = vmatpush1.msra.mxu0 0.0
    %1129 = vmatprep.mubr.f32.mxu0 0.0
    %1130 = vmatmul.mubr.f32.gmra.mrb[0].mxu0 %v1056
    %v1131 = vpop.f32.mrb[0].mxu0
    %v1132 = vadd.f32 0.0, %v1131
    %v1133 = vpop.f32.mrb[0].mxu0
    %1134 = vmatprep.mubr.f32.mxu0 0.0
    %1135 = vmatmul.mubr.f32.gmra.mrb[0].mxu0 %v1059
    %v1136 = vpop.f32.mrb[0].mxu0
    %v1137 = vadd.f32 0.0, %v1136
    %v1138 = vpop.f32.mrb[0].mxu0
    %1139 = vdwg.mxu0
    %s1140 = scalar_lea.vmem [#allocation4], 528
    %v1141 = vld [vmem:[%s1140] sm:$0xff]
    %v1142 = vld [vmem:[%s1140 + $0x8] sm:$0xff]
    %vm1143 = vcmask 97280
    %v1145 = vsel %vm1143, %v1132, 0
    %v1148 = vsel %vm1143, %v1137, 0
    %v1151 = vsel %vm144, %v1142, 0
    %1153 = vmatprep.subr.mxu0 0.0
    %1154 = vmatpush1.msra.mxu0 %v1141
    %1155 = vmatprep.subr.mxu0 0.0
    %1156 = vmatpush1.msra.mxu0 %v1151
    %1157 = vmatprep.subr.mxu0 0.0
    %1158 = vmatpush1.msra.mxu0 0.0
    %1159 = vmatprep.subr.mxu0 0.0
    %1160 = vmatpush1.msra.mxu0 0.0
    %1161 = vmatprep.subr.mxu0 0.0
    %1162 = vmatpush1.msra.mxu0 0.0
    %1163 = vmatprep.subr.mxu0 0.0
    %1164 = vmatpush1.msra.mxu0 0.0
    %1165 = vmatprep.subr.mxu0 0.0
    %1166 = vmatpush1.msra.mxu0 0.0
    %1167 = vmatprep.subr.mxu0 0.0
    %1168 = vmatpush1.msra.mxu0 0.0
    %1169 = vmatprep.subr.mxu0 0.0
    %1170 = vmatpush1.msra.mxu0 0.0
    %1171 = vmatprep.subr.mxu0 0.0
    %1172 = vmatpush1.msra.mxu0 0.0
    %1173 = vmatprep.subr.mxu0 0.0
    %1174 = vmatpush1.msra.mxu0 0.0
    %1175 = vmatprep.subr.mxu0 0.0
    %1176 = vmatpush1.msra.mxu0 0.0
    %1177 = vmatprep.subr.mxu0 0.0
    %1178 = vmatpush1.msra.mxu0 0.0
    %1179 = vmatprep.subr.mxu0 0.0
    %1180 = vmatpush1.msra.mxu0 0.0
    %1181 = vmatprep.subr.mxu0 0.0
    %1182 = vmatpush1.msra.mxu0 0.0
    %1183 = vmatprep.subr.mxu0 0.0
    %1184 = vmatpush1.msra.mxu0 0.0
    %1185 = vmatprep.subr.mxu0 0.0
    %1186 = vmatpush1.msra.mxu0 0.0
    %1187 = vmatprep.subr.mxu0 0.0
    %1188 = vmatpush1.msra.mxu0 0.0
    %1189 = vmatprep.subr.mxu0 0.0
    %1190 = vmatpush1.msra.mxu0 0.0
    %1191 = vmatprep.subr.mxu0 0.0
    %1192 = vmatpush1.msra.mxu0 0.0
    %1193 = vmatprep.subr.mxu0 0.0
    %1194 = vmatpush1.msra.mxu0 0.0
    %1195 = vmatprep.subr.mxu0 0.0
    %1196 = vmatpush1.msra.mxu0 0.0
    %1197 = vmatprep.subr.mxu0 0.0
    %1198 = vmatpush1.msra.mxu0 0.0
    %1199 = vmatprep.subr.mxu0 0.0
    %1200 = vmatpush1.msra.mxu0 0.0
    %1201 = vmatprep.subr.mxu0 0.0
    %1202 = vmatpush1.msra.mxu0 0.0
    %1203 = vmatprep.subr.mxu0 0.0
    %1204 = vmatpush1.msra.mxu0 0.0
    %1205 = vmatprep.subr.mxu0 0.0
    %1206 = vmatpush1.msra.mxu0 0.0
    %1207 = vmatprep.subr.mxu0 0.0
    %1208 = vmatpush1.msra.mxu0 0.0
    %1209 = vmatprep.subr.mxu0 0.0
    %1210 = vmatpush1.msra.mxu0 0.0
    %1211 = vmatprep.subr.mxu0 0.0
    %1212 = vmatpush1.msra.mxu0 0.0
    %1213 = vmatprep.subr.mxu0 0.0
    %1214 = vmatpush1.msra.mxu0 0.0
    %1215 = vmatprep.subr.mxu0 0.0
    %1216 = vmatpush1.msra.mxu0 0.0
    %1217 = vmatprep.mubr.f32.mxu0 0.0
    %1218 = vmatmul.mubr.f32.gmra.mrb[0].mxu0 %v1145
    %v1219 = vpop.f32.mrb[0].mxu0
    %v1220 = vadd.f32 0.0, %v1219
    %v1221 = vpop.f32.mrb[0].mxu0
    %1222 = vmatprep.mubr.f32.mxu0 0.0
    %1223 = vmatmul.mubr.f32.gmra.mrb[0].mxu0 %v1148
    %v1224 = vpop.f32.mrb[0].mxu0
    %v1225 = vadd.f32 0.0, %v1224
    %v1226 = vpop.f32.mrb[0].mxu0
    %1227 = vdwg.mxu0
    %s1228 = scalar_lea.vmem [#allocation4], 672
    %v1229 = vld [vmem:[%s1228] sm:$0xff]
    %vm1230 = vcmask 130048
    %v1232 = vsel %vm1230, %v1229, 0
    %1234 = vmatprep.subr.mxu0 0.0
    %1235 = vmatpush1.msra.mxu0 %v1220
    %1236 = vmatprep.subr.mxu0 0.0
    %1237 = vmatpush1.msra.mxu0 %v1225
    %1238 = vmatprep.subr.mxu0 0.0
    %1239 = vmatpush1.msra.mxu0 0.0
    %1240 = vmatprep.subr.mxu0 0.0
    %1241 = vmatpush1.msra.mxu0 0.0
    %1242 = vmatprep.subr.mxu0 0.0
    %1243 = vmatpush1.msra.mxu0 0.0
    %1244 = vmatprep.subr.mxu0 0.0
    %1245 = vmatpush1.msra.mxu0 0.0
    %1246 = vmatprep.subr.mxu0 0.0
    %1247 = vmatpush1.msra.mxu0 0.0
    %1248 = vmatprep.subr.mxu0 0.0
    %1249 = vmatpush1.msra.mxu0 0.0
    %1250 = vmatprep.subr.mxu0 0.0
    %1251 = vmatpush1.msra.mxu0 0.0
    %1252 = vmatprep.subr.mxu0 0.0
    %1253 = vmatpush1.msra.mxu0 0.0
    %1254 = vmatprep.subr.mxu0 0.0
    %1255 = vmatpush1.msra.mxu0 0.0
    %1256 = vmatprep.subr.mxu0 0.0
    %1257 = vmatpush1.msra.mxu0 0.0
    %1258 = vmatprep.subr.mxu0 0.0
    %1259 = vmatpush1.msra.mxu0 0.0
    %1260 = vmatprep.subr.mxu0 0.0
    %1261 = vmatpush1.msra.mxu0 0.0
    %1262 = vmatprep.subr.mxu0 0.0
    %1263 = vmatpush1.msra.mxu0 0.0
    %1264 = vmatprep.subr.mxu0 0.0
    %1265 = vmatpush1.msra.mxu0 0.0
    %1266 = vmatprep.subr.mxu0 0.0
    %1267 = vmatpush1.msra.mxu0 0.0
    %1268 = vmatprep.subr.mxu0 0.0
    %1269 = vmatpush1.msra.mxu0 0.0
    %1270 = vmatprep.subr.mxu0 0.0
    %1271 = vmatpush1.msra.mxu0 0.0
    %1272 = vmatprep.subr.mxu0 0.0
    %1273 = vmatpush1.msra.mxu0 0.0
    %1274 = vmatprep.subr.mxu0 0.0
    %1275 = vmatpush1.msra.mxu0 0.0
    %1276 = vmatprep.subr.mxu0 0.0
    %1277 = vmatpush1.msra.mxu0 0.0
    %1278 = vmatprep.subr.mxu0 0.0
    %1279 = vmatpush1.msra.mxu0 0.0
    %1280 = vmatprep.subr.mxu0 0.0
    %1281 = vmatpush1.msra.mxu0 0.0
    %1282 = vmatprep.subr.mxu0 0.0
    %1283 = vmatpush1.msra.mxu0 0.0
    %1284 = vmatprep.subr.mxu0 0.0
    %1285 = vmatpush1.msra.mxu0 0.0
    %1286 = vmatprep.subr.mxu0 0.0
    %1287 = vmatpush1.msra.mxu0 0.0
    %1288 = vmatprep.subr.mxu0 0.0
    %1289 = vmatpush1.msra.mxu0 0.0
    %1290 = vmatprep.subr.mxu0 0.0
    %1291 = vmatpush1.msra.mxu0 0.0
    %1292 = vmatprep.subr.mxu0 0.0
    %1293 = vmatpush1.msra.mxu0 0.0
    %1294 = vmatprep.subr.mxu0 0.0
    %1295 = vmatpush1.msra.mxu0 0.0
    %1296 = vmatprep.subr.mxu0 0.0
    %1297 = vmatpush1.msra.mxu0 0.0
    %1298 = vmatprep.mubr.f32.mxu0 0.0
    %1299 = vmatmul.mubr.f32.gmra.mrb[0].mxu0 %v1232
    %v1300 = vpop.f32.mrb[0].mxu0
    %v1301 = vadd.f32 0.0, %v1300
    %v1302 = vpop.f32.mrb[0].mxu0
    %1303 = vdwg.mxu0
    %v1304 = vmax.f32 %v1301, 0.0
    %s1305 = scalar_lea.vmem [#allocation4], 720
    %v1306 = vld [vmem:[%s1305] sm:$0xff]
    %v1307 = vld [vmem:[%s1305 + $0x8] sm:$0xff]
    %v1309 = vsel %vm495, %v1306, 0
    %v1312 = vsel %vm495, %v1307, 0
    %1314 = vmatprep.subr.mxu0 0.0
    %1315 = vmatpush1.msra.mxu0 %v1304
    %1316 = vmatprep.subr.mxu0 0.0
    %1317 = vmatpush1.msra.mxu0 0.0
    %1318 = vmatprep.subr.mxu0 0.0
    %1319 = vmatpush1.msra.mxu0 0.0
    %1320 = vmatprep.subr.mxu0 0.0
    %1321 = vmatpush1.msra.mxu0 0.0
    %1322 = vmatprep.subr.mxu0 0.0
    %1323 = vmatpush1.msra.mxu0 0.0
    %1324 = vmatprep.subr.mxu0 0.0
    %1325 = vmatpush1.msra.mxu0 0.0
    %1326 = vmatprep.subr.mxu0 0.0
    %1327 = vmatpush1.msra.mxu0 0.0
    %1328 = vmatprep.subr.mxu0 0.0
    %1329 = vmatpush1.msra.mxu0 0.0
    %1330 = vmatprep.subr.mxu0 0.0
    %1331 = vmatpush1.msra.mxu0 0.0
    %1332 = vmatprep.subr.mxu0 0.0
    %1333 = vmatpush1.msra.mxu0 0.0
    %1334 = vmatprep.subr.mxu0 0.0
    %1335 = vmatpush1.msra.mxu0 0.0
    %1336 = vmatprep.subr.mxu0 0.0
    %1337 = vmatpush1.msra.mxu0 0.0
    %1338 = vmatprep.subr.mxu0 0.0
    %1339 = vmatpush1.msra.mxu0 0.0
    %1340 = vmatprep.subr.mxu0 0.0
    %1341 = vmatpush1.msra.mxu0 0.0
    %1342 = vmatprep.subr.mxu0 0.0
    %1343 = vmatpush1.msra.mxu0 0.0
    %1344 = vmatprep.subr.mxu0 0.0
    %1345 = vmatpush1.msra.mxu0 0.0
    %1346 = vmatprep.subr.mxu0 0.0
    %1347 = vmatpush1.msra.mxu0 0.0
    %1348 = vmatprep.subr.mxu0 0.0
    %1349 = vmatpush1.msra.mxu0 0.0
    %1350 = vmatprep.subr.mxu0 0.0
    %1351 = vmatpush1.msra.mxu0 0.0
    %1352 = vmatprep.subr.mxu0 0.0
    %1353 = vmatpush1.msra.mxu0 0.0
    %1354 = vmatprep.subr.mxu0 0.0
    %1355 = vmatpush1.msra.mxu0 0.0
    %1356 = vmatprep.subr.mxu0 0.0
    %1357 = vmatpush1.msra.mxu0 0.0
    %1358 = vmatprep.subr.mxu0 0.0
    %1359 = vmatpush1.msra.mxu0 0.0
    %1360 = vmatprep.subr.mxu0 0.0
    %1361 = vmatpush1.msra.mxu0 0.0
    %1362 = vmatprep.subr.mxu0 0.0
    %1363 = vmatpush1.msra.mxu0 0.0
    %1364 = vmatprep.subr.mxu0 0.0
    %1365 = vmatpush1.msra.mxu0 0.0
    %1366 = vmatprep.subr.mxu0 0.0
    %1367 = vmatpush1.msra.mxu0 0.0
    %1368 = vmatprep.subr.mxu0 0.0
    %1369 = vmatpush1.msra.mxu0 0.0
    %1370 = vmatprep.subr.mxu0 0.0
    %1371 = vmatpush1.msra.mxu0 0.0
    %1372 = vmatprep.subr.mxu0 0.0
    %1373 = vmatpush1.msra.mxu0 0.0
    %1374 = vmatprep.subr.mxu0 0.0
    %1375 = vmatpush1.msra.mxu0 0.0
    %1376 = vmatprep.subr.mxu0 0.0
    %1377 = vmatpush1.msra.mxu0 0.0
    %1378 = vmatprep.mubr.f32.mxu0 0.0
    %1379 = vmatmul.mubr.f32.gmra.mrb[0].mxu0 %v1309
    %v1380 = vpop.f32.mrb[0].mxu0
    %v1381 = vadd.f32 0.0, %v1380
    %v1382 = vpop.f32.mrb[0].mxu0
    %1383 = vmatprep.mubr.f32.mxu0 0.0
    %1384 = vmatmul.mubr.f32.gmra.mrb[0].mxu0 %v1312
    %v1385 = vpop.f32.mrb[0].mxu0
    %v1386 = vadd.f32 0.0, %v1385
    %v1387 = vpop.f32.mrb[0].mxu0
    %1388 = vdwg.mxu0
    %v1389 = vxor.u32 %v1381, 2147483648
    %v1390 = vxor.u32 %v1386, 2147483648
    %v1391 = vmul.f32 %v1389, 1.442695
    %v1392 = vpow.pop %v1391
    %v1393 = vmul.f32 %v1390, 1.442695
    %v1394 = vpow.pop %v1393
    %v1395 = vadd.f32 %v1392, 1.0
    %v1396 = vadd.f32 %v1394, 1.0
    %v1397 = vrcp.pop %v1395
    %v1398 = vmul.f32 1.0, %v1397
    %v1399 = vrcp.pop %v1396
    %v1400 = vmul.f32 1.0, %v1399
    %s1401 = scalar_lea.vmem [#allocation4], 576
    %v1402 = vld [vmem:[%s1401] sm:$0xff]
    %v1404 = vsel %vm657, %v1398, 0
    %v1407 = vsel %vm657, %v1400, 0
    %v1410 = vsel %vm419, %v1402, 0
    %1412 = vmatprep.subr.mxu0 0.0
    %1413 = vmatpush1.msra.mxu0 %v1410
    %1414 = vmatprep.subr.mxu0 0.0
    %1415 = vmatpush1.msra.mxu0 0.0
    %1416 = vmatprep.subr.mxu0 0.0
    %1417 = vmatpush1.msra.mxu0 0.0
    %1418 = vmatprep.subr.mxu0 0.0
    %1419 = vmatpush1.msra.mxu0 0.0
    %1420 = vmatprep.subr.mxu0 0.0
    %1421 = vmatpush1.msra.mxu0 0.0
    %1422 = vmatprep.subr.mxu0 0.0
    %1423 = vmatpush1.msra.mxu0 0.0
    %1424 = vmatprep.subr.mxu0 0.0
    %1425 = vmatpush1.msra.mxu0 0.0
    %1426 = vmatprep.subr.mxu0 0.0
    %1427 = vmatpush1.msra.mxu0 0.0
    %1428 = vmatprep.subr.mxu0 0.0
    %1429 = vmatpush1.msra.mxu0 0.0
    %1430 = vmatprep.subr.mxu0 0.0
    %1431 = vmatpush1.msra.mxu0 0.0
    %1432 = vmatprep.subr.mxu0 0.0
    %1433 = vmatpush1.msra.mxu0 0.0
    %1434 = vmatprep.subr.mxu0 0.0
    %1435 = vmatpush1.msra.mxu0 0.0
    %1436 = vmatprep.subr.mxu0 0.0
    %1437 = vmatpush1.msra.mxu0 0.0
    %1438 = vmatprep.subr.mxu0 0.0
    %1439 = vmatpush1.msra.mxu0 0.0
    %1440 = vmatprep.subr.mxu0 0.0
    %1441 = vmatpush1.msra.mxu0 0.0
    %1442 = vmatprep.subr.mxu0 0.0
    %1443 = vmatpush1.msra.mxu0 0.0
    %1444 = vmatprep.subr.mxu0 0.0
    %1445 = vmatpush1.msra.mxu0 0.0
    %1446 = vmatprep.subr.mxu0 0.0
    %1447 = vmatpush1.msra.mxu0 0.0
    %1448 = vmatprep.subr.mxu0 0.0
    %1449 = vmatpush1.msra.mxu0 0.0
    %1450 = vmatprep.subr.mxu0 0.0
    %1451 = vmatpush1.msra.mxu0 0.0
    %1452 = vmatprep.subr.mxu0 0.0
    %1453 = vmatpush1.msra.mxu0 0.0
    %1454 = vmatprep.subr.mxu0 0.0
    %1455 = vmatpush1.msra.mxu0 0.0
    %1456 = vmatprep.subr.mxu0 0.0
    %1457 = vmatpush1.msra.mxu0 0.0
    %1458 = vmatprep.subr.mxu0 0.0
    %1459 = vmatpush1.msra.mxu0 0.0
    %1460 = vmatprep.subr.mxu0 0.0
    %1461 = vmatpush1.msra.mxu0 0.0
    %1462 = vmatprep.subr.mxu0 0.0
    %1463 = vmatpush1.msra.mxu0 0.0
    %1464 = vmatprep.subr.mxu0 0.0
    %1465 = vmatpush1.msra.mxu0 0.0
    %1466 = vmatprep.subr.mxu0 0.0
    %1467 = vmatpush1.msra.mxu0 0.0
    %1468 = vmatprep.subr.mxu0 0.0
    %1469 = vmatpush1.msra.mxu0 0.0
    %1470 = vmatprep.subr.mxu0 0.0
    %1471 = vmatpush1.msra.mxu0 0.0
    %1472 = vmatprep.subr.mxu0 0.0
    %1473 = vmatpush1.msra.mxu0 0.0
    %1474 = vmatprep.subr.mxu0 0.0
    %1475 = vmatpush1.msra.mxu0 0.0
    %1476 = vmatprep.mubr.f32.mxu0 0.0
    %1477 = vmatmul.mubr.f32.gmra.mrb[0].mxu0 %v1404
    %v1478 = vpop.f32.mrb[0].mxu0
    %v1479 = vadd.f32 0.0, %v1478
    %v1480 = vpop.f32.mrb[0].mxu0
    %1481 = vmatprep.mubr.f32.mxu0 0.0
    %1482 = vmatmul.mubr.f32.gmra.mrb[0].mxu0 %v1407
    %v1483 = vpop.f32.mrb[0].mxu0
    %v1484 = vadd.f32 0.0, %v1483
    %v1485 = vpop.f32.mrb[0].mxu0
    %1486 = vdwg.mxu0
    %v1487 = vmul.f32 %v1132, %v1479
    %v1488 = vmul.f32 %v1137, %v1484
    %s1489 = scalar_lea.vmem [#allocation4], 768
    %v1490 = vld [vmem:[%s1489] sm:$0xff]
    %v1491 = vld [vmem:[%s1489 + $0x8] sm:$0xff]
    %v1493 = vsel %vm1143, %v1487, 0
    %v1496 = vsel %vm1143, %v1488, 0
    %v1499 = vsel %vm144, %v1491, 0
    %1501 = vmatprep.subr.mxu0 0.0
    %1502 = vmatpush1.msra.mxu0 %v1490
    %1503 = vmatprep.subr.mxu0 0.0
    %1504 = vmatpush1.msra.mxu0 %v1499
    %1505 = vmatprep.subr.mxu0 0.0
    %1506 = vmatpush1.msra.mxu0 0.0
    %1507 = vmatprep.subr.mxu0 0.0
    %1508 = vmatpush1.msra.mxu0 0.0
    %1509 = vmatprep.subr.mxu0 0.0
    %1510 = vmatpush1.msra.mxu0 0.0
    %1511 = vmatprep.subr.mxu0 0.0
    %1512 = vmatpush1.msra.mxu0 0.0
    %1513 = vmatprep.subr.mxu0 0.0
    %1514 = vmatpush1.msra.mxu0 0.0
    %1515 = vmatprep.subr.mxu0 0.0
    %1516 = vmatpush1.msra.mxu0 0.0
    %1517 = vmatprep.subr.mxu0 0.0
    %1518 = vmatpush1.msra.mxu0 0.0
    %1519 = vmatprep.subr.mxu0 0.0
    %1520 = vmatpush1.msra.mxu0 0.0
    %1521 = vmatprep.subr.mxu0 0.0
    %1522 = vmatpush1.msra.mxu0 0.0
    %1523 = vmatprep.subr.mxu0 0.0
    %1524 = vmatpush1.msra.mxu0 0.0
    %1525 = vmatprep.subr.mxu0 0.0
    %1526 = vmatpush1.msra.mxu0 0.0
    %1527 = vmatprep.subr.mxu0 0.0
    %1528 = vmatpush1.msra.mxu0 0.0
    %1529 = vmatprep.subr.mxu0 0.0
    %1530 = vmatpush1.msra.mxu0 0.0
    %1531 = vmatprep.subr.mxu0 0.0
    %1532 = vmatpush1.msra.mxu0 0.0
    %1533 = vmatprep.subr.mxu0 0.0
    %1534 = vmatpush1.msra.mxu0 0.0
    %1535 = vmatprep.subr.mxu0 0.0
    %1536 = vmatpush1.msra.mxu0 0.0
    %1537 = vmatprep.subr.mxu0 0.0
    %1538 = vmatpush1.msra.mxu0 0.0
    %1539 = vmatprep.subr.mxu0 0.0
    %1540 = vmatpush1.msra.mxu0 0.0
    %1541 = vmatprep.subr.mxu0 0.0
    %1542 = vmatpush1.msra.mxu0 0.0
    %1543 = vmatprep.subr.mxu0 0.0
    %1544 = vmatpush1.msra.mxu0 0.0
    %1545 = vmatprep.subr.mxu0 0.0
    %1546 = vmatpush1.msra.mxu0 0.0
    %1547 = vmatprep.subr.mxu0 0.0
    %1548 = vmatpush1.msra.mxu0 0.0
    %1549 = vmatprep.subr.mxu0 0.0
    %1550 = vmatpush1.msra.mxu0 0.0
    %1551 = vmatprep.subr.mxu0 0.0
    %1552 = vmatpush1.msra.mxu0 0.0
    %1553 = vmatprep.subr.mxu0 0.0
    %1554 = vmatpush1.msra.mxu0 0.0
    %1555 = vmatprep.subr.mxu0 0.0
    %1556 = vmatpush1.msra.mxu0 0.0
    %1557 = vmatprep.subr.mxu0 0.0
    %1558 = vmatpush1.msra.mxu0 0.0
    %1559 = vmatprep.subr.mxu0 0.0
    %1560 = vmatpush1.msra.mxu0 0.0
    %1561 = vmatprep.subr.mxu0 0.0
    %1562 = vmatpush1.msra.mxu0 0.0
    %1563 = vmatprep.subr.mxu0 0.0
    %1564 = vmatpush1.msra.mxu0 0.0
    %1565 = vmatprep.mubr.f32.mxu0 0.0
    %1566 = vmatmul.mubr.f32.gmra.mrb[0].mxu0 %v1493
    %v1567 = vpop.f32.mrb[0].mxu0
    %v1568 = vadd.f32 0.0, %v1567
    %v1569 = vpop.f32.mrb[0].mxu0
    %1570 = vmatprep.mubr.f32.mxu0 0.0
    %1571 = vmatmul.mubr.f32.gmra.mrb[0].mxu0 %v1496
    %v1572 = vpop.f32.mrb[0].mxu0
    %v1573 = vadd.f32 0.0, %v1572
    %v1574 = vpop.f32.mrb[0].mxu0
    %1575 = vdwg.mxu0
    %1578 = vrot.lane.b32.xlu0 %v1568, 127
    %v1579 = vpop.permute.xlu0 %1578
    %1580 = vrot.lane.b32.xlu0 %v1573, 127
    %v1581 = vpop.permute.xlu0 %1580
    %1584 = vrot.lane.b32.xlu0 %v1568, 126
    %v1585 = vpop.permute.xlu0 %1584
    %1586 = vrot.lane.b32.xlu0 %v1573, 126
    %v1587 = vpop.permute.xlu0 %1586
    %1590 = vrot.lane.b32.xlu0 %v1568, 125
    %v1591 = vpop.permute.xlu0 %1590
    %1592 = vrot.lane.b32.xlu0 %v1573, 125
    %v1593 = vpop.permute.xlu0 %1592
    %1596 = vrot.lane.b32.xlu0 %v1568, 124
    %v1597 = vpop.permute.xlu0 %1596
    %1598 = vrot.lane.b32.xlu0 %v1573, 124
    %v1599 = vpop.permute.xlu0 %1598
    %1602 = vrot.lane.b32.xlu0 %v1568, 123
    %v1603 = vpop.permute.xlu0 %1602
    %1604 = vrot.lane.b32.xlu0 %v1573, 123
    %v1605 = vpop.permute.xlu0 %1604
    %1608 = vrot.lane.b32.xlu0 %v1568, 122
    %v1609 = vpop.permute.xlu0 %1608
    %1610 = vrot.lane.b32.xlu0 %v1573, 122
    %v1611 = vpop.permute.xlu0 %1610
    %1614 = vrot.lane.b32.xlu0 %v1568, 121
    %v1615 = vpop.permute.xlu0 %1614
    %1616 = vrot.lane.b32.xlu0 %v1573, 121
    %v1617 = vpop.permute.xlu0 %1616
    %s1620 = scalar_lea.vmem [#allocation2], 32
    %v1621 = vld [vmem:[%s1620] sm:$0xff]
    %1622 = vmatprep.subr.mxu0 0.0
    %1623 = vmatpush1.msra.mxu0 %v1568
    %1624 = vmatprep.subr.mxu0 0.0
    %1625 = vmatpush1.msra.mxu0 %v1573
    %1626 = vmatprep.subr.mxu0 0.0
    %1627 = vmatpush1.msra.mxu0 %v1579
    %1628 = vmatprep.subr.mxu0 0.0
    %1629 = vmatpush1.msra.mxu0 %v1581
    %1630 = vmatprep.subr.mxu0 0.0
    %1631 = vmatpush1.msra.mxu0 %v1585
    %1632 = vmatprep.subr.mxu0 0.0
    %1633 = vmatpush1.msra.mxu0 %v1587
    %1634 = vmatprep.subr.mxu0 0.0
    %1635 = vmatpush1.msra.mxu0 %v1591
    %1636 = vmatprep.subr.mxu0 0.0
    %1637 = vmatpush1.msra.mxu0 %v1593
    %1638 = vmatprep.subr.mxu0 0.0
    %1639 = vmatpush1.msra.mxu0 %v1597
    %1640 = vmatprep.subr.mxu0 0.0
    %1641 = vmatpush1.msra.mxu0 %v1599
    %1642 = vmatprep.subr.mxu0 0.0
    %1643 = vmatpush1.msra.mxu0 %v1603
    %1644 = vmatprep.subr.mxu0 0.0
    %1645 = vmatpush1.msra.mxu0 %v1605
    %1646 = vmatprep.subr.mxu0 0.0
    %1647 = vmatpush1.msra.mxu0 %v1609
    %1648 = vmatprep.subr.mxu0 0.0
    %1649 = vmatpush1.msra.mxu0 %v1611
    %1650 = vmatprep.subr.mxu0 0.0
    %1651 = vmatpush1.msra.mxu0 %v1615
    %1652 = vmatprep.subr.mxu0 0.0
    %1653 = vmatpush1.msra.mxu0 %v1617
    %1654 = vmatprep.subr.mxu0 0.0
    %1655 = vmatpush1.msra.mxu0 0.0
    %1656 = vmatprep.subr.mxu0 0.0
    %1657 = vmatpush1.msra.mxu0 0.0
    %1658 = vmatprep.subr.mxu0 0.0
    %1659 = vmatpush1.msra.mxu0 0.0
    %1660 = vmatprep.subr.mxu0 0.0
    %1661 = vmatpush1.msra.mxu0 0.0
    %1662 = vmatprep.subr.mxu0 0.0
    %1663 = vmatpush1.msra.mxu0 0.0
    %1664 = vmatprep.subr.mxu0 0.0
    %1665 = vmatpush1.msra.mxu0 0.0
    %1666 = vmatprep.subr.mxu0 0.0
    %1667 = vmatpush1.msra.mxu0 0.0
    %1668 = vmatprep.subr.mxu0 0.0
    %1669 = vmatpush1.msra.mxu0 0.0
    %1670 = vmatprep.subr.mxu0 0.0
    %1671 = vmatpush1.msra.mxu0 0.0
    %1672 = vmatprep.subr.mxu0 0.0
    %1673 = vmatpush1.msra.mxu0 0.0
    %1674 = vmatprep.subr.mxu0 0.0
    %1675 = vmatpush1.msra.mxu0 0.0
    %1676 = vmatprep.subr.mxu0 0.0
    %1677 = vmatpush1.msra.mxu0 0.0
    %1678 = vmatprep.subr.mxu0 0.0
    %1679 = vmatpush1.msra.mxu0 0.0
    %1680 = vmatprep.subr.mxu0 0.0
    %1681 = vmatpush1.msra.mxu0 0.0
    %1682 = vmatprep.subr.mxu0 0.0
    %1683 = vmatpush1.msra.mxu0 0.0
    %1684 = vmatprep.subr.mxu0 0.0
    %1685 = vmatpush1.msra.mxu0 0.0
    %1686 = vmatprep.mubr.f32.mxu0 0.0
    %1687 = vmatmul.mubr.f32.gmra.mrb[0].mxu0 %v1621
    %v1688 = vpop.f32.mrb[0].mxu0
    %v1689 = vadd.f32 0.0, %v1688
    %v1690 = vpop.f32.mrb[0].mxu0
    %1691 = vdwg.mxu0
    %s1692 = scalar_lea.vmem [#allocation4], 1008
    %v1693 = vld [vmem:[%s1692] sm:$0xff]
    %1695 = vset.pattern.permute.xlu0 0
    %1696 = vperm.xlu0 %1695, %v1693
    %v1697 = vpop.permute.xlu0 %1696
    %v1699 = vmul.f32 %v1689, %v1697
    %1700 = vset.pattern.permute.xlu0 1
    %1701 = vperm.xlu0 %1700, %v1693
    %v1702 = vpop.permute.xlu0 %1701
    %v1704 = vadd.f32 %v1699, %v1702
    %v1705 = vmax.f32 %v1704, 0.0
    %s1706 = scalar_lea.vmem [#allocation4], 816
    %v1707 = vld [vmem:[%s1706] sm:$0xff]
    %v1708 = vld [vmem:[%s1706 + $0x8] sm:$0xff]
    %v1709 = vld [vmem:[%s1706 + $0x10] sm:$0xff]
    %vm1710 = vcmask 171008
    %v1712 = vsel %vm1710, %v1705, 0
    %v1715 = vsel %vm337, %v1709, 0
    %1717 = vmatprep.subr.mxu0 0.0
    %1718 = vmatpush1.msra.mxu0 %v1707
    %1719 = vmatprep.subr.mxu0 0.0
    %1720 = vmatpush1.msra.mxu0 %v1708
    %1721 = vmatprep.subr.mxu0 0.0
    %1722 = vmatpush1.msra.mxu0 %v1715
    %1723 = vmatprep.subr.mxu0 0.0
    %1724 = vmatpush1.msra.mxu0 0.0
    %1725 = vmatprep.subr.mxu0 0.0
    %1726 = vmatpush1.msra.mxu0 0.0
    %1727 = vmatprep.subr.mxu0 0.0
    %1728 = vmatpush1.msra.mxu0 0.0
    %1729 = vmatprep.subr.mxu0 0.0
    %1730 = vmatpush1.msra.mxu0 0.0
    %1731 = vmatprep.subr.mxu0 0.0
    %1732 = vmatpush1.msra.mxu0 0.0
    %1733 = vmatprep.subr.mxu0 0.0
    %1734 = vmatpush1.msra.mxu0 0.0
    %1735 = vmatprep.subr.mxu0 0.0
    %1736 = vmatpush1.msra.mxu0 0.0
    %1737 = vmatprep.subr.mxu0 0.0
    %1738 = vmatpush1.msra.mxu0 0.0
    %1739 = vmatprep.subr.mxu0 0.0
    %1740 = vmatpush1.msra.mxu0 0.0
    %1741 = vmatprep.subr.mxu0 0.0
    %1742 = vmatpush1.msra.mxu0 0.0
    %1743 = vmatprep.subr.mxu0 0.0
    %1744 = vmatpush1.msra.mxu0 0.0
    %1745 = vmatprep.subr.mxu0 0.0
    %1746 = vmatpush1.msra.mxu0 0.0
    %1747 = vmatprep.subr.mxu0 0.0
    %1748 = vmatpush1.msra.mxu0 0.0
    %1749 = vmatprep.subr.mxu0 0.0
    %1750 = vmatpush1.msra.mxu0 0.0
    %1751 = vmatprep.subr.mxu0 0.0
    %1752 = vmatpush1.msra.mxu0 0.0
    %1753 = vmatprep.subr.mxu0 0.0
    %1754 = vmatpush1.msra.mxu0 0.0
    %1755 = vmatprep.subr.mxu0 0.0
    %1756 = vmatpush1.msra.mxu0 0.0
    %1757 = vmatprep.subr.mxu0 0.0
    %1758 = vmatpush1.msra.mxu0 0.0
    %1759 = vmatprep.subr.mxu0 0.0
    %1760 = vmatpush1.msra.mxu0 0.0
    %1761 = vmatprep.subr.mxu0 0.0
    %1762 = vmatpush1.msra.mxu0 0.0
    %1763 = vmatprep.subr.mxu0 0.0
    %1764 = vmatpush1.msra.mxu0 0.0
    %1765 = vmatprep.subr.mxu0 0.0
    %1766 = vmatpush1.msra.mxu0 0.0
    %1767 = vmatprep.subr.mxu0 0.0
    %1768 = vmatpush1.msra.mxu0 0.0
    %1769 = vmatprep.subr.mxu0 0.0
    %1770 = vmatpush1.msra.mxu0 0.0
    %1771 = vmatprep.subr.mxu0 0.0
    %1772 = vmatpush1.msra.mxu0 0.0
    %1773 = vmatprep.subr.mxu0 0.0
    %1774 = vmatpush1.msra.mxu0 0.0
    %1775 = vmatprep.subr.mxu0 0.0
    %1776 = vmatpush1.msra.mxu0 0.0
    %1777 = vmatprep.subr.mxu0 0.0
    %1778 = vmatpush1.msra.mxu0 0.0
    %1779 = vmatprep.subr.mxu0 0.0
    %1780 = vmatpush1.msra.mxu0 0.0
    %1781 = vmatprep.mubr.f32.mxu0 0.0
    %1782 = vmatmul.mubr.f32.gmra.mrb[0].mxu0 %v1712
    %v1783 = vpop.f32.mrb[0].mxu0
    %v1784 = vadd.f32 0.0, %v1783
    %v1785 = vpop.f32.mrb[0].mxu0
    %1786 = vdwg.mxu0
    %1788 = vrot.lane.b32.xlu0 %v1784, 127
    %v1789 = vpop.permute.xlu0 %1788
    %v1791 = vmax.f32 %v1784, %v1789
    %s1792 = scalar_lea.vmem [#allocation4], 864
    %v1793 = vld [vmem:[%s1792] sm:$0xff]
    %v1794 = vld [vmem:[%s1792 + $0x8] sm:$0xff]
    %v1795 = vld [vmem:[%s1792 + $0x10] sm:$0xff]
    %vm1796 = vcmask 138240
    %v1798 = vsel %vm1796, %v1791, 0
    %v1801 = vsel %vm248, %v1795, 0
    %1803 = vmatprep.subr.mxu0 0.0
    %1804 = vmatpush1.msra.mxu0 %v1793
    %1805 = vmatprep.subr.mxu0 0.0
    %1806 = vmatpush1.msra.mxu0 %v1794
    %1807 = vmatprep.subr.mxu0 0.0
    %1808 = vmatpush1.msra.mxu0 %v1801
    %1809 = vmatprep.subr.mxu0 0.0
    %1810 = vmatpush1.msra.mxu0 0.0
    %1811 = vmatprep.subr.mxu0 0.0
    %1812 = vmatpush1.msra.mxu0 0.0
    %1813 = vmatprep.subr.mxu0 0.0
    %1814 = vmatpush1.msra.mxu0 0.0
    %1815 = vmatprep.subr.mxu0 0.0
    %1816 = vmatpush1.msra.mxu0 0.0
    %1817 = vmatprep.subr.mxu0 0.0
    %1818 = vmatpush1.msra.mxu0 0.0
    %1819 = vmatprep.subr.mxu0 0.0
    %1820 = vmatpush1.msra.mxu0 0.0
    %1821 = vmatprep.subr.mxu0 0.0
    %1822 = vmatpush1.msra.mxu0 0.0
    %1823 = vmatprep.subr.mxu0 0.0
    %1824 = vmatpush1.msra.mxu0 0.0
    %1825 = vmatprep.subr.mxu0 0.0
    %1826 = vmatpush1.msra.mxu0 0.0
    %1827 = vmatprep.subr.mxu0 0.0
    %1828 = vmatpush1.msra.mxu0 0.0
    %1829 = vmatprep.subr.mxu0 0.0
    %1830 = vmatpush1.msra.mxu0 0.0
    %1831 = vmatprep.subr.mxu0 0.0
    %1832 = vmatpush1.msra.mxu0 0.0
    %1833 = vmatprep.subr.mxu0 0.0
    %1834 = vmatpush1.msra.mxu0 0.0
    %1835 = vmatprep.subr.mxu0 0.0
    %1836 = vmatpush1.msra.mxu0 0.0
    %1837 = vmatprep.subr.mxu0 0.0
    %1838 = vmatpush1.msra.mxu0 0.0
    %1839 = vmatprep.subr.mxu0 0.0
    %1840 = vmatpush1.msra.mxu0 0.0
    %1841 = vmatprep.subr.mxu0 0.0
    %1842 = vmatpush1.msra.mxu0 0.0
    %1843 = vmatprep.subr.mxu0 0.0
    %1844 = vmatpush1.msra.mxu0 0.0
    %1845 = vmatprep.subr.mxu0 0.0
    %1846 = vmatpush1.msra.mxu0 0.0
    %1847 = vmatprep.subr.mxu0 0.0
    %1848 = vmatpush1.msra.mxu0 0.0
    %1849 = vmatprep.subr.mxu0 0.0
    %1850 = vmatpush1.msra.mxu0 0.0
    %1851 = vmatprep.subr.mxu0 0.0
    %1852 = vmatpush1.msra.mxu0 0.0
    %1853 = vmatprep.subr.mxu0 0.0
    %1854 = vmatpush1.msra.mxu0 0.0
    %1855 = vmatprep.subr.mxu0 0.0
    %1856 = vmatpush1.msra.mxu0 0.0
    %1857 = vmatprep.subr.mxu0 0.0
    %1858 = vmatpush1.msra.mxu0 0.0
    %1859 = vmatprep.subr.mxu0 0.0
    %1860 = vmatpush1.msra.mxu0 0.0
    %1861 = vmatprep.subr.mxu0 0.0
    %1862 = vmatpush1.msra.mxu0 0.0
    %1863 = vmatprep.subr.mxu0 0.0
    %1864 = vmatpush1.msra.mxu0 0.0
    %1865 = vmatprep.subr.mxu0 0.0
    %1866 = vmatpush1.msra.mxu0 0.0
    %1867 = vmatprep.mubr.f32.mxu0 0.0
    %1868 = vmatmul.mubr.f32.gmra.mrb[0].mxu0 %v1798
    %v1869 = vpop.f32.mrb[0].mxu0
    %v1870 = vadd.f32 0.0, %v1869
    %v1871 = vpop.f32.mrb[0].mxu0
    %1872 = vdwg.mxu0
    %s1873 = scalar_lea.vmem [#allocation4], 912
    %v1874 = vld [vmem:[%s1873] sm:$0xff]
    %v1876 = vsel %vm495, %v1870, 0
    %1878 = vmatprep.subr.mxu0 0.0
    %1879 = vmatpush1.msra.mxu0 %v1874
    %1880 = vmatprep.subr.mxu0 0.0
    %1881 = vmatpush1.msra.mxu0 0.0
    %1882 = vmatprep.subr.mxu0 0.0
    %1883 = vmatpush1.msra.mxu0 0.0
    %1884 = vmatprep.subr.mxu0 0.0
    %1885 = vmatpush1.msra.mxu0 0.0
    %1886 = vmatprep.subr.mxu0 0.0
    %1887 = vmatpush1.msra.mxu0 0.0
    %1888 = vmatprep.subr.mxu0 0.0
    %1889 = vmatpush1.msra.mxu0 0.0
    %1890 = vmatprep.subr.mxu0 0.0
    %1891 = vmatpush1.msra.mxu0 0.0
    %1892 = vmatprep.subr.mxu0 0.0
    %1893 = vmatpush1.msra.mxu0 0.0
    %1894 = vmatprep.subr.mxu0 0.0
    %1895 = vmatpush1.msra.mxu0 0.0
    %1896 = vmatprep.subr.mxu0 0.0
    %1897 = vmatpush1.msra.mxu0 0.0
    %1898 = vmatprep.subr.mxu0 0.0
    %1899 = vmatpush1.msra.mxu0 0.0
    %1900 = vmatprep.subr.mxu0 0.0
    %1901 = vmatpush1.msra.mxu0 0.0
    %1902 = vmatprep.subr.mxu0 0.0
    %1903 = vmatpush1.msra.mxu0 0.0
    %1904 = vmatprep.subr.mxu0 0.0
    %1905 = vmatpush1.msra.mxu0 0.0
    %1906 = vmatprep.subr.mxu0 0.0
    %1907 = vmatpush1.msra.mxu0 0.0
    %1908 = vmatprep.subr.mxu0 0.0
    %1909 = vmatpush1.msra.mxu0 0.0
    %1910 = vmatprep.subr.mxu0 0.0
    %1911 = vmatpush1.msra.mxu0 0.0
    %1912 = vmatprep.subr.mxu0 0.0
    %1913 = vmatpush1.msra.mxu0 0.0
    %1914 = vmatprep.subr.mxu0 0.0
    %1915 = vmatpush1.msra.mxu0 0.0
    %1916 = vmatprep.subr.mxu0 0.0
    %1917 = vmatpush1.msra.mxu0 0.0
    %1918 = vmatprep.subr.mxu0 0.0
    %1919 = vmatpush1.msra.mxu0 0.0
    %1920 = vmatprep.subr.mxu0 0.0
    %1921 = vmatpush1.msra.mxu0 0.0
    %1922 = vmatprep.subr.mxu0 0.0
    %1923 = vmatpush1.msra.mxu0 0.0
    %1924 = vmatprep.subr.mxu0 0.0
    %1925 = vmatpush1.msra.mxu0 0.0
    %1926 = vmatprep.subr.mxu0 0.0
    %1927 = vmatpush1.msra.mxu0 0.0
    %1928 = vmatprep.subr.mxu0 0.0
    %1929 = vmatpush1.msra.mxu0 0.0
    %1930 = vmatprep.subr.mxu0 0.0
    %1931 = vmatpush1.msra.mxu0 0.0
    %1932 = vmatprep.subr.mxu0 0.0
    %1933 = vmatpush1.msra.mxu0 0.0
    %1934 = vmatprep.subr.mxu0 0.0
    %1935 = vmatpush1.msra.mxu0 0.0
    %1936 = vmatprep.subr.mxu0 0.0
    %1937 = vmatpush1.msra.mxu0 0.0
    %1938 = vmatprep.subr.mxu0 0.0
    %1939 = vmatpush1.msra.mxu0 0.0
    %1940 = vmatprep.subr.mxu0 0.0
    %1941 = vmatpush1.msra.mxu0 0.0
    %1942 = vmatprep.mubr.f32.mxu0 0.0
    %1943 = vmatmul.mubr.f32.gmra.mrb[0].mxu0 %v1876
    %v1944 = vpop.f32.mrb[0].mxu0
    %v1945 = vadd.f32 0.0, %v1944
    %v1946 = vpop.f32.mrb[0].mxu0
    %1947 = vdwg.mxu0
    %s1948 = scalar_lea.vmem [#allocation4], 1056
    %v1949 = vld [vmem:[%s1948] sm:$0xff]
    %v1951 = vsel %vm572, %v1949, 0
    %v1954 = vsel %vm144, %v1945, 0
    %1956 = vmatprep.subr.mxu0 0.0
    %1957 = vmatpush1.msra.mxu0 %v1954
    %1958 = vmatprep.subr.mxu0 0.0
    %1959 = vmatpush1.msra.mxu0 0.0
    %1960 = vmatprep.subr.mxu0 0.0
    %1961 = vmatpush1.msra.mxu0 0.0
    %1962 = vmatprep.subr.mxu0 0.0
    %1963 = vmatpush1.msra.mxu0 0.0
    %1964 = vmatprep.subr.mxu0 0.0
    %1965 = vmatpush1.msra.mxu0 0.0
    %1966 = vmatprep.subr.mxu0 0.0
    %1967 = vmatpush1.msra.mxu0 0.0
    %1968 = vmatprep.subr.mxu0 0.0
    %1969 = vmatpush1.msra.mxu0 0.0
    %1970 = vmatprep.subr.mxu0 0.0
    %1971 = vmatpush1.msra.mxu0 0.0
    %1972 = vmatprep.subr.mxu0 0.0
    %1973 = vmatpush1.msra.mxu0 0.0
    %1974 = vmatprep.subr.mxu0 0.0
    %1975 = vmatpush1.msra.mxu0 0.0
    %1976 = vmatprep.subr.mxu0 0.0
    %1977 = vmatpush1.msra.mxu0 0.0
    %1978 = vmatprep.subr.mxu0 0.0
    %1979 = vmatpush1.msra.mxu0 0.0
    %1980 = vmatprep.subr.mxu0 0.0
    %1981 = vmatpush1.msra.mxu0 0.0
    %1982 = vmatprep.subr.mxu0 0.0
    %1983 = vmatpush1.msra.mxu0 0.0
    %1984 = vmatprep.subr.mxu0 0.0
    %1985 = vmatpush1.msra.mxu0 0.0
    %1986 = vmatprep.subr.mxu0 0.0
    %1987 = vmatpush1.msra.mxu0 0.0
    %1988 = vmatprep.subr.mxu0 0.0
    %1989 = vmatpush1.msra.mxu0 0.0
    %1990 = vmatprep.subr.mxu0 0.0
    %1991 = vmatpush1.msra.mxu0 0.0
    %1992 = vmatprep.subr.mxu0 0.0
    %1993 = vmatpush1.msra.mxu0 0.0
    %1994 = vmatprep.subr.mxu0 0.0
    %1995 = vmatpush1.msra.mxu0 0.0
    %1996 = vmatprep.subr.mxu0 0.0
    %1997 = vmatpush1.msra.mxu0 0.0
    %1998 = vmatprep.subr.mxu0 0.0
    %1999 = vmatpush1.msra.mxu0 0.0
    %2000 = vmatprep.subr.mxu0 0.0
    %2001 = vmatpush1.msra.mxu0 0.0
    %2002 = vmatprep.subr.mxu0 0.0
    %2003 = vmatpush1.msra.mxu0 0.0
    %2004 = vmatprep.subr.mxu0 0.0
    %2005 = vmatpush1.msra.mxu0 0.0
    %2006 = vmatprep.subr.mxu0 0.0
    %2007 = vmatpush1.msra.mxu0 0.0
    %2008 = vmatprep.subr.mxu0 0.0
    %2009 = vmatpush1.msra.mxu0 0.0
    %2010 = vmatprep.subr.mxu0 0.0
    %2011 = vmatpush1.msra.mxu0 0.0
    %2012 = vmatprep.subr.mxu0 0.0
    %2013 = vmatpush1.msra.mxu0 0.0
    %2014 = vmatprep.subr.mxu0 0.0
    %2015 = vmatpush1.msra.mxu0 0.0
    %2016 = vmatprep.subr.mxu0 0.0
    %2017 = vmatpush1.msra.mxu0 0.0
    %2018 = vmatprep.subr.mxu0 0.0
    %2019 = vmatpush1.msra.mxu0 0.0
    %2020 = vmatprep.mubr.f32.mxu0 0.0
    %2021 = vmatmul.mubr.f32.gmra.mrb[0].mxu0 %v1951
    %v2022 = vpop.f32.mrb[0].mxu0
    %v2023 = vadd.f32 0.0, %v2022
    %v2024 = vpop.f32.mrb[0].mxu0
    %2025 = vdwg.mxu0
    %v2026 = vmax.f32 %v2023, 0.0
    %s2027 = scalar_lea.vmem [#allocation4], 1104
    %v2028 = vld [vmem:[%s2027] sm:$0xff]
    %v2030 = vsel %vm657, %v2028, 0
    %v2033 = vsel %vm419, %v2026, 0
    %2035 = vmatprep.subr.mxu0 0.0
    %2036 = vmatpush1.msra.mxu0 %v2033
    %2037 = vmatprep.subr.mxu0 0.0
    %2038 = vmatpush1.msra.mxu0 0.0
    %2039 = vmatprep.subr.mxu0 0.0
    %2040 = vmatpush1.msra.mxu0 0.0
    %2041 = vmatprep.subr.mxu0 0.0
    %2042 = vmatpush1.msra.mxu0 0.0
    %2043 = vmatprep.subr.mxu0 0.0
    %2044 = vmatpush1.msra.mxu0 0.0
    %2045 = vmatprep.subr.mxu0 0.0
    %2046 = vmatpush1.msra.mxu0 0.0
    %2047 = vmatprep.subr.mxu0 0.0
    %2048 = vmatpush1.msra.mxu0 0.0
    %2049 = vmatprep.subr.mxu0 0.0
    %2050 = vmatpush1.msra.mxu0 0.0
    %2051 = vmatprep.subr.mxu0 0.0
    %2052 = vmatpush1.msra.mxu0 0.0
    %2053 = vmatprep.subr.mxu0 0.0
    %2054 = vmatpush1.msra.mxu0 0.0
    %2055 = vmatprep.subr.mxu0 0.0
    %2056 = vmatpush1.msra.mxu0 0.0
    %2057 = vmatprep.subr.mxu0 0.0
    %2058 = vmatpush1.msra.mxu0 0.0
    %2059 = vmatprep.subr.mxu0 0.0
    %2060 = vmatpush1.msra.mxu0 0.0
    %2061 = vmatprep.subr.mxu0 0.0
    %2062 = vmatpush1.msra.mxu0 0.0
    %2063 = vmatprep.subr.mxu0 0.0
    %2064 = vmatpush1.msra.mxu0 0.0
    %2065 = vmatprep.subr.mxu0 0.0
    %2066 = vmatpush1.msra.mxu0 0.0
    %2067 = vmatprep.subr.mxu0 0.0
    %2068 = vmatpush1.msra.mxu0 0.0
    %2069 = vmatprep.subr.mxu0 0.0
    %2070 = vmatpush1.msra.mxu0 0.0
    %2071 = vmatprep.subr.mxu0 0.0
    %2072 = vmatpush1.msra.mxu0 0.0
    %2073 = vmatprep.subr.mxu0 0.0
    %2074 = vmatpush1.msra.mxu0 0.0
    %2075 = vmatprep.subr.mxu0 0.0
    %2076 = vmatpush1.msra.mxu0 0.0
    %2077 = vmatprep.subr.mxu0 0.0
    %2078 = vmatpush1.msra.mxu0 0.0
    %2079 = vmatprep.subr.mxu0 0.0
    %2080 = vmatpush1.msra.mxu0 0.0
    %2081 = vmatprep.subr.mxu0 0.0
    %2082 = vmatpush1.msra.mxu0 0.0
    %2083 = vmatprep.subr.mxu0 0.0
    %2084 = vmatpush1.msra.mxu0 0.0
    %2085 = vmatprep.subr.mxu0 0.0
    %2086 = vmatpush1.msra.mxu0 0.0
    %2087 = vmatprep.subr.mxu0 0.0
    %2088 = vmatpush1.msra.mxu0 0.0
    %2089 = vmatprep.subr.mxu0 0.0
    %2090 = vmatpush1.msra.mxu0 0.0
    %2091 = vmatprep.subr.mxu0 0.0
    %2092 = vmatpush1.msra.mxu0 0.0
    %2093 = vmatprep.subr.mxu0 0.0
    %2094 = vmatpush1.msra.mxu0 0.0
    %2095 = vmatprep.subr.mxu0 0.0
    %2096 = vmatpush1.msra.mxu0 0.0
    %2097 = vmatprep.subr.mxu0 0.0
    %2098 = vmatpush1.msra.mxu0 0.0
    %2099 = vmatprep.mubr.f32.mxu0 0.0
    %2100 = vmatmul.mubr.f32.gmra.mrb[0].mxu0 %v2030
    %v2101 = vpop.f32.mrb[0].mxu0
    %v2102 = vadd.f32 0.0, %v2101
    %v2103 = vpop.f32.mrb[0].mxu0
    %2104 = vdwg.mxu0
    %v2105 = vxor.u32 %v2102, 2147483648
    %v2106 = vmul.f32 %v2105, 1.442695
    %v2107 = vpow.pop %v2106
    %v2108 = vadd.f32 %v2107, 1.0
    %v2109 = vrcp.pop %v2108
    %v2110 = vmul.f32 1.0, %v2109
    %s2111 = scalar_lea.vmem [#allocation4], 960
    %v2112 = vld [vmem:[%s2111] sm:$0xff]
    %v2114 = vsel %vm657, %v2110, 0
    %v2117 = vsel %vm419, %v2112, 0
    %2119 = vmatprep.subr.mxu0 0.0
    %2120 = vmatpush1.msra.mxu0 %v2117
    %2121 = vmatprep.subr.mxu0 0.0
    %2122 = vmatpush1.msra.mxu0 0.0
    %2123 = vmatprep.subr.mxu0 0.0
    %2124 = vmatpush1.msra.mxu0 0.0
    %2125 = vmatprep.subr.mxu0 0.0
    %2126 = vmatpush1.msra.mxu0 0.0
    %2127 = vmatprep.subr.mxu0 0.0
    %2128 = vmatpush1.msra.mxu0 0.0
    %2129 = vmatprep.subr.mxu0 0.0
    %2130 = vmatpush1.msra.mxu0 0.0
    %2131 = vmatprep.subr.mxu0 0.0
    %2132 = vmatpush1.msra.mxu0 0.0
    %2133 = vmatprep.subr.mxu0 0.0
    %2134 = vmatpush1.msra.mxu0 0.0
    %2135 = vmatprep.subr.mxu0 0.0
    %2136 = vmatpush1.msra.mxu0 0.0
    %2137 = vmatprep.subr.mxu0 0.0
    %2138 = vmatpush1.msra.mxu0 0.0
    %2139 = vmatprep.subr.mxu0 0.0
    %2140 = vmatpush1.msra.mxu0 0.0
    %2141 = vmatprep.subr.mxu0 0.0
    %2142 = vmatpush1.msra.mxu0 0.0
    %2143 = vmatprep.subr.mxu0 0.0
    %2144 = vmatpush1.msra.mxu0 0.0
    %2145 = vmatprep.subr.mxu0 0.0
    %2146 = vmatpush1.msra.mxu0 0.0
    %2147 = vmatprep.subr.mxu0 0.0
    %2148 = vmatpush1.msra.mxu0 0.0
    %2149 = vmatprep.subr.mxu0 0.0
    %2150 = vmatpush1.msra.mxu0 0.0
    %2151 = vmatprep.subr.mxu0 0.0
    %2152 = vmatpush1.msra.mxu0 0.0
    %2153 = vmatprep.subr.mxu0 0.0
    %2154 = vmatpush1.msra.mxu0 0.0
    %2155 = vmatprep.subr.mxu0 0.0
    %2156 = vmatpush1.msra.mxu0 0.0
    %2157 = vmatprep.subr.mxu0 0.0
    %2158 = vmatpush1.msra.mxu0 0.0
    %2159 = vmatprep.subr.mxu0 0.0
    %2160 = vmatpush1.msra.mxu0 0.0
    %2161 = vmatprep.subr.mxu0 0.0
    %2162 = vmatpush1.msra.mxu0 0.0
    %2163 = vmatprep.subr.mxu0 0.0
    %2164 = vmatpush1.msra.mxu0 0.0
    %2165 = vmatprep.subr.mxu0 0.0
    %2166 = vmatpush1.msra.mxu0 0.0
    %2167 = vmatprep.subr.mxu0 0.0
    %2168 = vmatpush1.msra.mxu0 0.0
    %2169 = vmatprep.subr.mxu0 0.0
    %2170 = vmatpush1.msra.mxu0 0.0
    %2171 = vmatprep.subr.mxu0 0.0
    %2172 = vmatpush1.msra.mxu0 0.0
    %2173 = vmatprep.subr.mxu0 0.0
    %2174 = vmatpush1.msra.mxu0 0.0
    %2175 = vmatprep.subr.mxu0 0.0
    %2176 = vmatpush1.msra.mxu0 0.0
    %2177 = vmatprep.subr.mxu0 0.0
    %2178 = vmatpush1.msra.mxu0 0.0
    %2179 = vmatprep.subr.mxu0 0.0
    %2180 = vmatpush1.msra.mxu0 0.0
    %2181 = vmatprep.subr.mxu0 0.0
    %2182 = vmatpush1.msra.mxu0 0.0
    %2183 = vmatprep.mubr.f32.mxu0 0.0
    %2184 = vmatmul.mubr.f32.gmra.mrb[0].mxu0 %v2114
    %v2185 = vpop.f32.mrb[0].mxu0
    %v2186 = vadd.f32 0.0, %v2185
    %v2187 = vpop.f32.mrb[0].mxu0
    %2188 = vdwg.mxu0
    %v2189 = vmul.f32 %v1870, %v2186
    %s2190 = scalar_lea.vmem [#allocation4], 1152
    %v2191 = vld [vmem:[%s2190] sm:$0xff]
    %v2193 = vsel %vm495, %v2189, 0
    %2195 = vmatprep.subr.mxu0 0.0
    %2196 = vmatpush1.msra.mxu0 %v2191
    %2197 = vmatprep.subr.mxu0 0.0
    %2198 = vmatpush1.msra.mxu0 0.0
    %2199 = vmatprep.subr.mxu0 0.0
    %2200 = vmatpush1.msra.mxu0 0.0
    %2201 = vmatprep.subr.mxu0 0.0
    %2202 = vmatpush1.msra.mxu0 0.0
    %2203 = vmatprep.subr.mxu0 0.0
    %2204 = vmatpush1.msra.mxu0 0.0
    %2205 = vmatprep.subr.mxu0 0.0
    %2206 = vmatpush1.msra.mxu0 0.0
    %2207 = vmatprep.subr.mxu0 0.0
    %2208 = vmatpush1.msra.mxu0 0.0
    %2209 = vmatprep.subr.mxu0 0.0
    %2210 = vmatpush1.msra.mxu0 0.0
    %2211 = vmatprep.subr.mxu0 0.0
    %2212 = vmatpush1.msra.mxu0 0.0
    %2213 = vmatprep.subr.mxu0 0.0
    %2214 = vmatpush1.msra.mxu0 0.0
    %2215 = vmatprep.subr.mxu0 0.0
    %2216 = vmatpush1.msra.mxu0 0.0
    %2217 = vmatprep.subr.mxu0 0.0
    %2218 = vmatpush1.msra.mxu0 0.0
    %2219 = vmatprep.subr.mxu0 0.0
    %2220 = vmatpush1.msra.mxu0 0.0
    %2221 = vmatprep.subr.mxu0 0.0
    %2222 = vmatpush1.msra.mxu0 0.0
    %2223 = vmatprep.subr.mxu0 0.0
    %2224 = vmatpush1.msra.mxu0 0.0
    %2225 = vmatprep.subr.mxu0 0.0
    %2226 = vmatpush1.msra.mxu0 0.0
    %2227 = vmatprep.subr.mxu0 0.0
    %2228 = vmatpush1.msra.mxu0 0.0
    %2229 = vmatprep.subr.mxu0 0.0
    %2230 = vmatpush1.msra.mxu0 0.0
    %2231 = vmatprep.subr.mxu0 0.0
    %2232 = vmatpush1.msra.mxu0 0.0
    %2233 = vmatprep.subr.mxu0 0.0
    %2234 = vmatpush1.msra.mxu0 0.0
    %2235 = vmatprep.subr.mxu0 0.0
    %2236 = vmatpush1.msra.mxu0 0.0
    %2237 = vmatprep.subr.mxu0 0.0
    %2238 = vmatpush1.msra.mxu0 0.0
    %2239 = vmatprep.subr.mxu0 0.0
    %2240 = vmatpush1.msra.mxu0 0.0
    %2241 = vmatprep.subr.mxu0 0.0
    %2242 = vmatpush1.msra.mxu0 0.0
    %2243 = vmatprep.subr.mxu0 0.0
    %2244 = vmatpush1.msra.mxu0 0.0
    %2245 = vmatprep.subr.mxu0 0.0
    %2246 = vmatpush1.msra.mxu0 0.0
    %2247 = vmatprep.subr.mxu0 0.0
    %2248 = vmatpush1.msra.mxu0 0.0
    %2249 = vmatprep.subr.mxu0 0.0
    %2250 = vmatpush1.msra.mxu0 0.0
    %2251 = vmatprep.subr.mxu0 0.0
    %2252 = vmatpush1.msra.mxu0 0.0
    %2253 = vmatprep.subr.mxu0 0.0
    %2254 = vmatpush1.msra.mxu0 0.0
    %2255 = vmatprep.subr.mxu0 0.0
    %2256 = vmatpush1.msra.mxu0 0.0
    %2257 = vmatprep.subr.mxu0 0.0
    %2258 = vmatpush1.msra.mxu0 0.0
    %2259 = vmatprep.mubr.f32.mxu0 0.0
    %2260 = vmatmul.mubr.f32.gmra.mrb[0].mxu0 %v2193
    %v2261 = vpop.f32.mrb[0].mxu0
    %v2262 = vadd.f32 0.0, %v2261
    %v2263 = vpop.f32.mrb[0].mxu0
    %2264 = vdwg.mxu0
    %2266 = vrot.lane.b32.xlu0 %v2262, 8
    %v2267 = vpop.permute.xlu0 %2266
    %v2269 = vsel %vm495, %v2189, %v2267
    %vm2270 = vcmask 93184
    %2271 = vst.msk [vmem:[%s3] sm:$0xf] %vm2270, %v2269
    // Predicated region
    $region22: #{_lambda_.1} parent=1 // pred_check
      _
    $region23: #{_lambda_.1} parent=1 // pred_check_branch
      %2273 = sbr.rel (0) target = $region25
    $region24: #{_lambda_.1} parent=1 // pred_region
      _
    $region25: #{_lambda_.1} parent=1 // pred_fallthru
      _
    // Predicated region
    $region26: #{_lambda_.1} parent=1 // pred_check
      _
    $region27: #{_lambda_.1} parent=1 // pred_check_branch
      %2275 = sbr.rel (0) target = $region29
    $region28: #{_lambda_.1} parent=1 // pred_region
      _
    $region29: #{_lambda_.1} parent=1 // pred_fallthru
      _
    %2276 = vsyncpa [#allocation3], 1
    %2277 = vsyncpa [#allocation5], 1

</llo_original>
